<compile_context>
chip_gen: v5e
topology: v5e:2x2
jax: 0.10.0
libtpu: 0.0.40
codegen_flags: <defaults>
</compile_context>

<pallas_src>
import functools

import jax
import jax.numpy as jnp
from jax.experimental import pallas as pl
from jax.experimental.pallas import tpu as pltpu


def bigru_kernel(x_ref, w_in_ref, b_in_ref, w_rec_ref, b_hn_ref, mask_ref,
                 out_ref, hfin_ref, *, seq_len, batch, hidden):
    """Fused bidirectional GRU: whole recurrence in one kernel invocation (no grid).

    Gate column layout (width 6H): [r_f | r_b | z_f | z_b | n_f | n_b].
    x_ref rows for step t hold [emb[t] | emb[T-1-t]] so backward inputs are pre-flipped
    and every address below is a compile-time constant.
    """
    T, B, H = seq_len, batch, hidden
    H2, H4 = 2 * H, 4 * H

    # --- Input projection for all T steps & both directions: ONE pre-loop MXU matmul.
    gi = jnp.dot(x_ref[...], w_in_ref[...],
                 preferred_element_type=jnp.float32)          # (T*B, 6H)
    gi = gi + b_in_ref[...]                                   # folded biases, added once

    w_rec = w_rec_ref[...]                                    # (2H, 6H) bf16, block-diag
    b_hn = b_hn_ref[...]                                      # (1, 2H)  f32

    h = jnp.zeros((B, H2), jnp.float32)                       # [h_fwd | h_bwd]

    # Fully unrolled static recurrence (T is small); all indices are Python constants.
    for t in range(T):
        gi_t = gi[t * B:(t + 1) * B, :]                       # (B, 6H) static slice

        # Single fused recurrent matmul for both directions (bf16 operands, f32 acc).
        gh = jnp.dot(h.astype(jnp.bfloat16), w_rec,
                     preferred_element_type=jnp.float32)      # (B, 6H)

        # One sigmoid over the contiguous 4H r/z block, one tanh over the 2H n block.
        rz = jax.nn.sigmoid(gi_t[:, :H4] + gh[:, :H4])        # [r_f|r_b|z_f|z_b]
        r = rz[:, :H2]
        z = rz[:, H2:H4]
        n = jnp.tanh(gi_t[:, H4:] + r * (gh[:, H4:] + b_hn))  # [n_f|n_b]
        h_new = (1.0 - z) * n + z * h

        # Packed-sequence masking (precomputed): fwd half valid iff t < len[b],
        # bwd half valid iff (T-1-t) < len[b].
        m = mask_ref[t]                                       # (B, 2H) f32 in {0,1}
        o = m * h_new                                         # padded positions -> 0
        h = h + m * (h_new - h)                               # freeze h on padded steps

        # Outputs land directly in the PyTorch [fwd | bwd] layout; out_ref stays in VMEM
        # and is written back to HBM once at kernel end.
        out_ref[t, :, 0:H] = o[:, 0:H]                        # fwd half at abs time t
        out_ref[T - 1 - t, :, H:H2] = o[:, H:H2]              # bwd half at abs time T-1-t

    hfin_ref[...] = h                                         # final hidden [h_f | h_b]


def encoder_rnn_forward(src, src_len, embedding, w_ih, w_hh, b_ih, b_hh, hidden):
    """Forward pass of EncoderRNN (bidirectional single-layer GRU, frozen embedding)."""
    T, B = src.shape
    H = hidden
    E = embedding.shape[1]
    f32 = jnp.float32

    # --- frozen embedding lookup (glue) + backward-time-aligned pairing --------------
    emb = jnp.take(embedding, src, axis=0).astype(f32)                    # (T, B, E)
    x_pair = jnp.concatenate([emb, emb[::-1]], axis=-1)                   # (T, B, 2E)
    x2d = x_pair.reshape(T * B, 2 * E)

    # --- validity mask: fwd valid iff t < len[b]; bwd (flipped time) = valid reversed
    lens = src_len.astype(jnp.int32)
    valid = (jnp.arange(T, dtype=jnp.int32)[:, None] < lens[None, :])     # (T, B) bool
    mask = jnp.concatenate(
        [jnp.broadcast_to(valid[:, :, None], (T, B, H)),
         jnp.broadcast_to(valid[::-1, :, None], (T, B, H))],
        axis=-1).astype(f32)                                              # (T, B, 2H)

    # --- fused parameters (column layout [r_f|r_b|z_f|z_b|n_f|n_b]) ------------------
    Wf = w_ih[0].astype(f32)   # (3H, E) rows [r; z; n]
    Wb = w_ih[1].astype(f32)
    zE = jnp.zeros((E, H), f32)
    w_in = jnp.concatenate([
        jnp.concatenate([Wf[0:H].T, zE, Wf[H:2 * H].T, zE, Wf[2 * H:].T, zE], axis=1),
        jnp.concatenate([zE, Wb[0:H].T, zE, Wb[H:2 * H].T, zE, Wb[2 * H:].T], axis=1),
    ], axis=0)                                                            # (2E, 6H)

    b_in = jnp.concatenate([
        b_ih[0, 0:H] + b_hh[0, 0:H],            # r_f
        b_ih[1, 0:H] + b_hh[1, 0:H],            # r_b
        b_ih[0, H:2 * H] + b_hh[0, H:2 * H],    # z_f
        b_ih[1, H:2 * H] + b_hh[1, H:2 * H],    # z_b
        b_ih[0, 2 * H:],                        # n_f (b_hh_n kept separate)
        b_ih[1, 2 * H:],                        # n_b
    ]).astype(f32).reshape(1, 6 * H)

    Uf = w_hh[0].astype(f32)   # (3H, H)
    Ub = w_hh[1].astype(f32)
    zH = jnp.zeros((H, H), f32)
    w_rec = jnp.concatenate([
        jnp.concatenate([Uf[0:H].T, zH, Uf[H:2 * H].T, zH, Uf[2 * H:].T, zH], axis=1),
        jnp.concatenate([zH, Ub[0:H].T, zH, Ub[H:2 * H].T, zH, Ub[2 * H:].T], axis=1),
    ], axis=0).astype(jnp.bfloat16)                                       # (2H, 6H)

    b_hn = jnp.concatenate([b_hh[0, 2 * H:], b_hh[1, 2 * H:]]).astype(f32).reshape(1, 2 * H)

    kernel = functools.partial(bigru_kernel, seq_len=T, batch=B, hidden=H)

    out, hfin = pl.pallas_call(
        kernel,
        out_shape=(jax.ShapeDtypeStruct((T, B, 2 * H), f32),
                   jax.ShapeDtypeStruct((B, 2 * H), f32)),
        in_specs=[pl.BlockSpec(memory_space=pltpu.MemorySpace.VMEM)] * 6,
        out_specs=(pl.BlockSpec(memory_space=pltpu.MemorySpace.VMEM),
                   pl.BlockSpec(memory_space=pltpu.MemorySpace.VMEM)),
    )(x2d, w_in, b_in, w_rec, b_hn, mask)

    # output: (T, B, 2H) already in [fwd | bwd] layout; hidden: _cat_directions result.
    hidden_cat = hfin[None]                                               # (1, B, 2H)
    return out, hidden_cat


# ---------------- pure-JAX reference (f32, for correctness check only) ----------------
def _gru_cell_ref(x, h, w_ih, w_hh, b_ih, b_hh, H):
    gi = x @ w_ih.T + b_ih
    gh = h @ w_hh.T + b_hh
    r = jax.nn.sigmoid(gi[:, :H] + gh[:, :H])
    z = jax.nn.sigmoid(gi[:, H:2 * H] + gh[:, H:2 * H])
    n = jnp.tanh(gi[:, 2 * H:] + r * gh[:, 2 * H:])
    return (1.0 - z) * n + z * h


def ref_forward(src, src_len, embedding, w_ih, w_hh, b_ih, b_hh, H):
    T, B = src.shape
    emb = jnp.take(embedding, src, axis=0).astype(jnp.float32)
    lens = src_len.astype(jnp.int32)

    def run_dir(d):
        def step(h, t):
            abs_t = t if d == 0 else T - 1 - t
            h_new = _gru_cell_ref(emb[abs_t], h, w_ih[d], w_hh[d], b_ih[d], b_hh[d], H)
            valid = (abs_t < lens)[:, None]
            h_upd = jnp.where(valid, h_new, h)
            return h_upd, (abs_t, jnp.where(valid, h_new, 0.0))

        h0 = jnp.zeros((B, H), jnp.float32)
        hT, (abs_ts, outs) = jax.lax.scan(step, h0, jnp.arange(T))
        out_abs = jnp.zeros((T, B, H), jnp.float32).at[abs_ts].set(outs)
        return out_abs, hT

    out_f, h_f = run_dir(0)
    out_b, h_b = run_dir(1)
    return (jnp.concatenate([out_f, out_b], axis=-1),
            jnp.concatenate([h_f, h_b], axis=-1)[None])


if __name__ == "__main__":
    T, B, E, H, vocab = 8, 4, 16, 32, 20

    key = jax.random.PRNGKey(0)
    k_emb, k_src, k1, k2, k3, k4 = jax.random.split(key, 6)

    # deterministic "pre-trained" embedding + GRU params (PyTorch U(-1/sqrt(H), 1/sqrt(H)))
    embedding = jax.random.normal(k_emb, (vocab, E), jnp.float32)
    src = jax.random.randint(k_src, (T, B), 0, vocab, jnp.int32)
    src_len = jnp.array([8, 7, 5, 3], jnp.int32)   # sorted desc, as pack_padded_sequence requires
    assert int(src_len.min()) >= 1, "pack_padded_sequence forbids zero-length sequences"

    bound = 1.0 / (H ** 0.5)
    w_ih = jax.random.uniform(k1, (2, 3 * H, E), jnp.float32, -bound, bound)
    w_hh = jax.random.uniform(k2, (2, 3 * H, H), jnp.float32, -bound, bound)
    b_ih = jax.random.uniform(k3, (2, 3 * H), jnp.float32, -bound, bound)
    b_hh = jax.random.uniform(k4, (2, 3 * H), jnp.float32, -bound, bound)

    output, hidden_state = encoder_rnn_forward(src, src_len, embedding,
                                               w_ih, w_hh, b_ih, b_hh, H)
    jax.block_until_ready((output, hidden_state))

    ref_out, ref_hid = ref_forward(src, src_len, embedding, w_ih, w_hh, b_ih, b_hh, H)

    assert output.shape == (T, B, 2 * H), output.shape
    assert hidden_state.shape == (1, B, 2 * H), hidden_state.shape
    # Tolerance relaxed vs. pure-f32 because the recurrent matmul runs in bf16 (f32 acc).
    assert bool(jnp.allclose(output, ref_out, atol=3e-2, rtol=3e-2)), \
        float(jnp.max(jnp.abs(output - ref_out)))
    assert bool(jnp.allclose(hidden_state, ref_hid, atol=3e-2, rtol=3e-2)), \
        float(jnp.max(jnp.abs(hidden_state - ref_hid)))
    print("KERNEL_OK")
</pallas_src>

<mosaic_0001>
module attributes {stable_mosaic.version = 11 : i64} {
  func.func @bigru_kernel(%arg0: memref<32x32xf32, #tpu.memory_space<vmem>>, %arg1: memref<32x192xf32, #tpu.memory_space<vmem>>, %arg2: memref<1x192xf32, #tpu.memory_space<vmem>>, %arg3: memref<64x192xbf16, #tpu.memory_space<vmem>>, %arg4: memref<1x64xf32, #tpu.memory_space<vmem>>, %arg5: memref<8x4x64xf32, #tpu.memory_space<vmem>>, %arg6: memref<8x4x64xf32, #tpu.memory_space<vmem>>, %arg7: memref<4x64xf32, #tpu.memory_space<vmem>>) attributes {dimension_semantics = [], scalar_prefetch = 0 : i64, scratch_operands = 0 : i64, tpu.core_type = #tpu.core_type<tc>} {
    %c0 = arith.constant 0 : index
    %c0_0 = arith.constant 0 : index
    %0 = vector.load %arg0[%c0, %c0_0] : memref<32x32xf32, #tpu.memory_space<vmem>>, vector<32x32xf32>
    %c0_1 = arith.constant 0 : index
    %c0_2 = arith.constant 0 : index
    %1 = vector.load %arg1[%c0_1, %c0_2] : memref<32x192xf32, #tpu.memory_space<vmem>>, vector<32x192xf32>
    %cst = arith.constant dense<0.000000e+00> : vector<32x192xf32>
    %2 = tpu.matmul %0, %1, %cst {dimension_numbers = #tpu.dot_dimension_numbers<[1], [0], [0], [1], [0, 0, 1, 1], [], []>} : vector<32x32xf32>, vector<32x192xf32>, vector<32x192xf32> -> vector<32x192xf32>
    %c0_3 = arith.constant 0 : index
    %c0_4 = arith.constant 0 : index
    %3 = vector.load %arg2[%c0_3, %c0_4] : memref<1x192xf32, #tpu.memory_space<vmem>>, vector<1x192xf32>
    %4 = vector.broadcast %3 : vector<1x192xf32> to vector<32x192xf32>
    %5 = arith.addf %2, %4 : vector<32x192xf32>
    %c0_5 = arith.constant 0 : index
    %c0_6 = arith.constant 0 : index
    %6 = vector.load %arg3[%c0_5, %c0_6] : memref<64x192xbf16, #tpu.memory_space<vmem>>, vector<64x192xbf16>
    %c0_7 = arith.constant 0 : index
    %c0_8 = arith.constant 0 : index
    %7 = vector.load %arg4[%c0_7, %c0_8] : memref<1x64xf32, #tpu.memory_space<vmem>>, vector<1x64xf32>
    %cst_9 = arith.constant 0.000000e+00 : f32
    %8 = vector.broadcast %cst_9 : f32 to vector<4x64xf32>
    %9 = vector.extract_strided_slice %5 {offsets = [0, 0], sizes = [4, 192], strides = [1, 1]} : vector<32x192xf32> to vector<4x192xf32>
    %10 = arith.truncf %8 : vector<4x64xf32> to vector<4x64xbf16>
    %cst_10 = arith.constant dense<0.000000e+00> : vector<4x192xf32>
    %11 = tpu.matmul %10, %6, %cst_10 {dimension_numbers = #tpu.dot_dimension_numbers<[1], [0], [0], [1], [0, 0, 1, 1], [], []>} : vector<4x64xbf16>, vector<64x192xbf16>, vector<4x192xf32> -> vector<4x192xf32>
    %12 = vector.extract_strided_slice %9 {offsets = [0, 0], sizes = [4, 128], strides = [1, 1]} : vector<4x192xf32> to vector<4x128xf32>
    %13 = vector.extract_strided_slice %11 {offsets = [0, 0], sizes = [4, 128], strides = [1, 1]} : vector<4x192xf32> to vector<4x128xf32>
    %14 = arith.addf %12, %13 : vector<4x128xf32>
    %15 = arith.negf %14 : vector<4x128xf32>
    %16 = math.exp %15 : vector<4x128xf32>
    %cst_11 = arith.constant 1.000000e+00 : f32
    %17 = vector.broadcast %cst_11 : f32 to vector<4x128xf32>
    %18 = arith.addf %17, %16 : vector<4x128xf32>
    %19 = arith.divf %17, %18 : vector<4x128xf32>
    %20 = vector.extract_strided_slice %19 {offsets = [0, 0], sizes = [4, 64], strides = [1, 1]} : vector<4x128xf32> to vector<4x64xf32>
    %21 = vector.extract_strided_slice %19 {offsets = [0, 64], sizes = [4, 64], strides = [1, 1]} : vector<4x128xf32> to vector<4x64xf32>
    %22 = vector.extract_strided_slice %9 {offsets = [0, 128], sizes = [4, 64], strides = [1, 1]} : vector<4x192xf32> to vector<4x64xf32>
    %23 = vector.extract_strided_slice %11 {offsets = [0, 128], sizes = [4, 64], strides = [1, 1]} : vector<4x192xf32> to vector<4x64xf32>
    %24 = vector.broadcast %7 : vector<1x64xf32> to vector<4x64xf32>
    %25 = arith.addf %23, %24 : vector<4x64xf32>
    %26 = arith.mulf %20, %25 : vector<4x64xf32>
    %27 = arith.addf %22, %26 : vector<4x64xf32>
    %28 = math.tanh %27 : vector<4x64xf32>
    %cst_12 = arith.constant 1.000000e+00 : f32
    %29 = vector.broadcast %cst_12 : f32 to vector<4x64xf32>
    %30 = arith.subf %29, %21 : vector<4x64xf32>
    %31 = arith.mulf %30, %28 : vector<4x64xf32>
    %32 = arith.mulf %21, %8 : vector<4x64xf32>
    %33 = arith.addf %31, %32 : vector<4x64xf32>
    %c0_13 = arith.constant 0 : index
    %c0_14 = arith.constant 0 : index
    %c0_15 = arith.constant 0 : index
    %34 = vector.load %arg5[%c0_13, %c0_14, %c0_15] : memref<8x4x64xf32, #tpu.memory_space<vmem>>, vector<1x4x64xf32>
    %35 = vector.shape_cast %34 : vector<1x4x64xf32> to vector<4x64xf32>
    %36 = arith.mulf %35, %33 : vector<4x64xf32>
    %37 = arith.subf %33, %8 : vector<4x64xf32>
    %38 = arith.mulf %35, %37 : vector<4x64xf32>
    %39 = arith.addf %8, %38 : vector<4x64xf32>
    %40 = vector.extract_strided_slice %36 {offsets = [0, 0], sizes = [4, 32], strides = [1, 1]} : vector<4x64xf32> to vector<4x32xf32>
    %c0_16 = arith.constant 0 : index
    %c0_17 = arith.constant 0 : index
    %c0_18 = arith.constant 0 : index
    %41 = vector.load %arg6[%c0_16, %c0_17, %c0_18] : memref<8x4x64xf32, #tpu.memory_space<vmem>>, vector<1x4x32xf32>
    %42 = vector.shape_cast %41 : vector<1x4x32xf32> to vector<4x32xf32>
    %43 = vector.shape_cast %40 : vector<4x32xf32> to vector<1x4x32xf32>
    tpu.vector_store %arg6[%c0_16, %c0_17, %c0_18], %43 {strides = array<i32>} : memref<8x4x64xf32, #tpu.memory_space<vmem>>, vector<1x4x32xf32>,
    %44 = vector.extract_strided_slice %36 {offsets = [0, 32], sizes = [4, 32], strides = [1, 1]} : vector<4x64xf32> to vector<4x32xf32>
    %c7 = arith.constant 7 : index
    %c0_19 = arith.constant 0 : index
    %c32 = arith.constant 32 : index
    %45 = vector.load %arg6[%c7, %c0_19, %c32] : memref<8x4x64xf32, #tpu.memory_space<vmem>>, vector<1x4x32xf32>
    %46 = vector.shape_cast %45 : vector<1x4x32xf32> to vector<4x32xf32>
    %47 = vector.shape_cast %44 : vector<4x32xf32> to vector<1x4x32xf32>
    tpu.vector_store %arg6[%c7, %c0_19, %c32], %47 {strides = array<i32>} : memref<8x4x64xf32, #tpu.memory_space<vmem>>, vector<1x4x32xf32>,
    %48 = vector.extract_strided_slice %5 {offsets = [4, 0], sizes = [4, 192], strides = [1, 1]} : vector<32x192xf32> to vector<4x192xf32>
    %49 = arith.truncf %39 : vector<4x64xf32> to vector<4x64xbf16>
    %cst_20 = arith.constant dense<0.000000e+00> : vector<4x192xf32>
    %50 = tpu.matmul %49, %6, %cst_20 {dimension_numbers = #tpu.dot_dimension_numbers<[1], [0], [0], [1], [0, 0, 1, 1], [], []>} : vector<4x64xbf16>, vector<64x192xbf16>, vector<4x192xf32> -> vector<4x192xf32>
    %51 = vector.extract_strided_slice %48 {offsets = [0, 0], sizes = [4, 128], strides = [1, 1]} : vector<4x192xf32> to vector<4x128xf32>
    %52 = vector.extract_strided_slice %50 {offsets = [0, 0], sizes = [4, 128], strides = [1, 1]} : vector<4x192xf32> to vector<4x128xf32>
    %53 = arith.addf %51, %52 : vector<4x128xf32>
    %54 = arith.negf %53 : vector<4x128xf32>
    %55 = math.exp %54 : vector<4x128xf32>
    %cst_21 = arith.constant 1.000000e+00 : f32
    %56 = vector.broadcast %cst_21 : f32 to vector<4x128xf32>
    %57 = arith.addf %56, %55 : vector<4x128xf32>
    %58 = arith.divf %56, %57 : vector<4x128xf32>
    %59 = vector.extract_strided_slice %58 {offsets = [0, 0], sizes = [4, 64], strides = [1, 1]} : vector<4x128xf32> to vector<4x64xf32>
    %60 = vector.extract_strided_slice %58 {offsets = [0, 64], sizes = [4, 64], strides = [1, 1]} : vector<4x128xf32> to vector<4x64xf32>
    %61 = vector.extract_strided_slice %48 {offsets = [0, 128], sizes = [4, 64], strides = [1, 1]} : vector<4x192xf32> to vector<4x64xf32>
    %62 = vector.extract_strided_slice %50 {offsets = [0, 128], sizes = [4, 64], strides = [1, 1]} : vector<4x192xf32> to vector<4x64xf32>
    %63 = vector.broadcast %7 : vector<1x64xf32> to vector<4x64xf32>
    %64 = arith.addf %62, %63 : vector<4x64xf32>
    %65 = arith.mulf %59, %64 : vector<4x64xf32>
    %66 = arith.addf %61, %65 : vector<4x64xf32>
    %67 = math.tanh %66 : vector<4x64xf32>
    %cst_22 = arith.constant 1.000000e+00 : f32
    %68 = vector.broadcast %cst_22 : f32 to vector<4x64xf32>
    %69 = arith.subf %68, %60 : vector<4x64xf32>
    %70 = arith.mulf %69, %67 : vector<4x64xf32>
    %71 = arith.mulf %60, %39 : vector<4x64xf32>
    %72 = arith.addf %70, %71 : vector<4x64xf32>
    %c1 = arith.constant 1 : index
    %c0_23 = arith.constant 0 : index
    %c0_24 = arith.constant 0 : index
    %73 = vector.load %arg5[%c1, %c0_23, %c0_24] : memref<8x4x64xf32, #tpu.memory_space<vmem>>, vector<1x4x64xf32>
    %74 = vector.shape_cast %73 : vector<1x4x64xf32> to vector<4x64xf32>
    %75 = arith.mulf %74, %72 : vector<4x64xf32>
    %76 = arith.subf %72, %39 : vector<4x64xf32>
    %77 = arith.mulf %74, %76 : vector<4x64xf32>
    %78 = arith.addf %39, %77 : vector<4x64xf32>
    %79 = vector.extract_strided_slice %75 {offsets = [0, 0], sizes = [4, 32], strides = [1, 1]} : vector<4x64xf32> to vector<4x32xf32>
    %c1_25 = arith.constant 1 : index
    %c0_26 = arith.constant 0 : index
    %c0_27 = arith.constant 0 : index
    %80 = vector.load %arg6[%c1_25, %c0_26, %c0_27] : memref<8x4x64xf32, #tpu.memory_space<vmem>>, vector<1x4x32xf32>
    %81 = vector.shape_cast %80 : vector<1x4x32xf32> to vector<4x32xf32>
    %82 = vector.shape_cast %79 : vector<4x32xf32> to vector<1x4x32xf32>
    tpu.vector_store %arg6[%c1_25, %c0_26, %c0_27], %82 {strides = array<i32>} : memref<8x4x64xf32, #tpu.memory_space<vmem>>, vector<1x4x32xf32>,
    %83 = vector.extract_strided_slice %75 {offsets = [0, 32], sizes = [4, 32], strides = [1, 1]} : vector<4x64xf32> to vector<4x32xf32>
    %c6 = arith.constant 6 : index
    %c0_28 = arith.constant 0 : index
    %c32_29 = arith.constant 32 : index
    %84 = vector.load %arg6[%c6, %c0_28, %c32_29] : memref<8x4x64xf32, #tpu.memory_space<vmem>>, vector<1x4x32xf32>
    %85 = vector.shape_cast %84 : vector<1x4x32xf32> to vector<4x32xf32>
    %86 = vector.shape_cast %83 : vector<4x32xf32> to vector<1x4x32xf32>
    tpu.vector_store %arg6[%c6, %c0_28, %c32_29], %86 {strides = array<i32>} : memref<8x4x64xf32, #tpu.memory_space<vmem>>, vector<1x4x32xf32>,
    %87 = vector.extract_strided_slice %5 {offsets = [8, 0], sizes = [4, 192], strides = [1, 1]} : vector<32x192xf32> to vector<4x192xf32>
    %88 = arith.truncf %78 : vector<4x64xf32> to vector<4x64xbf16>
    %cst_30 = arith.constant dense<0.000000e+00> : vector<4x192xf32>
    %89 = tpu.matmul %88, %6, %cst_30 {dimension_numbers = #tpu.dot_dimension_numbers<[1], [0], [0], [1], [0, 0, 1, 1], [], []>} : vector<4x64xbf16>, vector<64x192xbf16>, vector<4x192xf32> -> vector<4x192xf32>
    %90 = vector.extract_strided_slice %87 {offsets = [0, 0], sizes = [4, 128], strides = [1, 1]} : vector<4x192xf32> to vector<4x128xf32>
    %91 = vector.extract_strided_slice %89 {offsets = [0, 0], sizes = [4, 128], strides = [1, 1]} : vector<4x192xf32> to vector<4x128xf32>
    %92 = arith.addf %90, %91 : vector<4x128xf32>
    %93 = arith.negf %92 : vector<4x128xf32>
    %94 = math.exp %93 : vector<4x128xf32>
    %cst_31 = arith.constant 1.000000e+00 : f32
    %95 = vector.broadcast %cst_31 : f32 to vector<4x128xf32>
    %96 = arith.addf %95, %94 : vector<4x128xf32>
    %97 = arith.divf %95, %96 : vector<4x128xf32>
    %98 = vector.extract_strided_slice %97 {offsets = [0, 0], sizes = [4, 64], strides = [1, 1]} : vector<4x128xf32> to vector<4x64xf32>
    %99 = vector.extract_strided_slice %97 {offsets = [0, 64], sizes = [4, 64], strides = [1, 1]} : vector<4x128xf32> to vector<4x64xf32>
    %100 = vector.extract_strided_slice %87 {offsets = [0, 128], sizes = [4, 64], strides = [1, 1]} : vector<4x192xf32> to vector<4x64xf32>
    %101 = vector.extract_strided_slice %89 {offsets = [0, 128], sizes = [4, 64], strides = [1, 1]} : vector<4x192xf32> to vector<4x64xf32>
    %102 = vector.broadcast %7 : vector<1x64xf32> to vector<4x64xf32>
    %103 = arith.addf %101, %102 : vector<4x64xf32>
    %104 = arith.mulf %98, %103 : vector<4x64xf32>
    %105 = arith.addf %100, %104 : vector<4x64xf32>
    %106 = math.tanh %105 : vector<4x64xf32>
    %cst_32 = arith.constant 1.000000e+00 : f32
    %107 = vector.broadcast %cst_32 : f32 to vector<4x64xf32>
    %108 = arith.subf %107, %99 : vector<4x64xf32>
    %109 = arith.mulf %108, %106 : vector<4x64xf32>
    %110 = arith.mulf %99, %78 : vector<4x64xf32>
    %111 = arith.addf %109, %110 : vector<4x64xf32>
    %c2 = arith.constant 2 : index
    %c0_33 = arith.constant 0 : index
    %c0_34 = arith.constant 0 : index
    %112 = vector.load %arg5[%c2, %c0_33, %c0_34] : memref<8x4x64xf32, #tpu.memory_space<vmem>>, vector<1x4x64xf32>
    %113 = vector.shape_cast %112 : vector<1x4x64xf32> to vector<4x64xf32>
    %114 = arith.mulf %113, %111 : vector<4x64xf32>
    %115 = arith.subf %111, %78 : vector<4x64xf32>
    %116 = arith.mulf %113, %115 : vector<4x64xf32>
    %117 = arith.addf %78, %116 : vector<4x64xf32>
    %118 = vector.extract_strided_slice %114 {offsets = [0, 0], sizes = [4, 32], strides = [1, 1]} : vector<4x64xf32> to vector<4x32xf32>
    %c2_35 = arith.constant 2 : index
    %c0_36 = arith.constant 0 : index
    %c0_37 = arith.constant 0 : index
    %119 = vector.load %arg6[%c2_35, %c0_36, %c0_37] : memref<8x4x64xf32, #tpu.memory_space<vmem>>, vector<1x4x32xf32>
    %120 = vector.shape_cast %119 : vector<1x4x32xf32> to vector<4x32xf32>
    %121 = vector.shape_cast %118 : vector<4x32xf32> to vector<1x4x32xf32>
    tpu.vector_store %arg6[%c2_35, %c0_36, %c0_37], %121 {strides = array<i32>} : memref<8x4x64xf32, #tpu.memory_space<vmem>>, vector<1x4x32xf32>,
    %122 = vector.extract_strided_slice %114 {offsets = [0, 32], sizes = [4, 32], strides = [1, 1]} : vector<4x64xf32> to vector<4x32xf32>
    %c5 = arith.constant 5 : index
    %c0_38 = arith.constant 0 : index
    %c32_39 = arith.constant 32 : index
    %123 = vector.load %arg6[%c5, %c0_38, %c32_39] : memref<8x4x64xf32, #tpu.memory_space<vmem>>, vector<1x4x32xf32>
    %124 = vector.shape_cast %123 : vector<1x4x32xf32> to vector<4x32xf32>
    %125 = vector.shape_cast %122 : vector<4x32xf32> to vector<1x4x32xf32>
    tpu.vector_store %arg6[%c5, %c0_38, %c32_39], %125 {strides = array<i32>} : memref<8x4x64xf32, #tpu.memory_space<vmem>>, vector<1x4x32xf32>,
    %126 = vector.extract_strided_slice %5 {offsets = [12, 0], sizes = [4, 192], strides = [1, 1]} : vector<32x192xf32> to vector<4x192xf32>
    %127 = arith.truncf %117 : vector<4x64xf32> to vector<4x64xbf16>
    %cst_40 = arith.constant dense<0.000000e+00> : vector<4x192xf32>
    %128 = tpu.matmul %127, %6, %cst_40 {dimension_numbers = #tpu.dot_dimension_numbers<[1], [0], [0], [1], [0, 0, 1, 1], [], []>} : vector<4x64xbf16>, vector<64x192xbf16>, vector<4x192xf32> -> vector<4x192xf32>
    %129 = vector.extract_strided_slice %126 {offsets = [0, 0], sizes = [4, 128], strides = [1, 1]} : vector<4x192xf32> to vector<4x128xf32>
    %130 = vector.extract_strided_slice %128 {offsets = [0, 0], sizes = [4, 128], strides = [1, 1]} : vector<4x192xf32> to vector<4x128xf32>
    %131 = arith.addf %129, %130 : vector<4x128xf32>
    %132 = arith.negf %131 : vector<4x128xf32>
    %133 = math.exp %132 : vector<4x128xf32>
    %cst_41 = arith.constant 1.000000e+00 : f32
    %134 = vector.broadcast %cst_41 : f32 to vector<4x128xf32>
    %135 = arith.addf %134, %133 : vector<4x128xf32>
    %136 = arith.divf %134, %135 : vector<4x128xf32>
    %137 = vector.extract_strided_slice %136 {offsets = [0, 0], sizes = [4, 64], strides = [1, 1]} : vector<4x128xf32> to vector<4x64xf32>
    %138 = vector.extract_strided_slice %136 {offsets = [0, 64], sizes = [4, 64], strides = [1, 1]} : vector<4x128xf32> to vector<4x64xf32>
    %139 = vector.extract_strided_slice %126 {offsets = [0, 128], sizes = [4, 64], strides = [1, 1]} : vector<4x192xf32> to vector<4x64xf32>
    %140 = vector.extract_strided_slice %128 {offsets = [0, 128], sizes = [4, 64], strides = [1, 1]} : vector<4x192xf32> to vector<4x64xf32>
    %141 = vector.broadcast %7 : vector<1x64xf32> to vector<4x64xf32>
    %142 = arith.addf %140, %141 : vector<4x64xf32>
    %143 = arith.mulf %137, %142 : vector<4x64xf32>
    %144 = arith.addf %139, %143 : vector<4x64xf32>
    %145 = math.tanh %144 : vector<4x64xf32>
    %cst_42 = arith.constant 1.000000e+00 : f32
    %146 = vector.broadcast %cst_42 : f32 to vector<4x64xf32>
    %147 = arith.subf %146, %138 : vector<4x64xf32>
    %148 = arith.mulf %147, %145 : vector<4x64xf32>
    %149 = arith.mulf %138, %117 : vector<4x64xf32>
    %150 = arith.addf %148, %149 : vector<4x64xf32>
    %c3 = arith.constant 3 : index
    %c0_43 = arith.constant 0 : index
    %c0_44 = arith.constant 0 : index
    %151 = vector.load %arg5[%c3, %c0_43, %c0_44] : memref<8x4x64xf32, #tpu.memory_space<vmem>>, vector<1x4x64xf32>
    %152 = vector.shape_cast %151 : vector<1x4x64xf32> to vector<4x64xf32>
    %153 = arith.mulf %152, %150 : vector<4x64xf32>
    %154 = arith.subf %150, %117 : vector<4x64xf32>
    %155 = arith.mulf %152, %154 : vector<4x64xf32>
    %156 = arith.addf %117, %155 : vector<4x64xf32>
    %157 = vector.extract_strided_slice %153 {offsets = [0, 0], sizes = [4, 32], strides = [1, 1]} : vector<4x64xf32> to vector<4x32xf32>
    %c3_45 = arith.constant 3 : index
    %c0_46 = arith.constant 0 : index
    %c0_47 = arith.constant 0 : index
    %158 = vector.load %arg6[%c3_45, %c0_46, %c0_47] : memref<8x4x64xf32, #tpu.memory_space<vmem>>, vector<1x4x32xf32>
    %159 = vector.shape_cast %158 : vector<1x4x32xf32> to vector<4x32xf32>
    %160 = vector.shape_cast %157 : vector<4x32xf32> to vector<1x4x32xf32>
    tpu.vector_store %arg6[%c3_45, %c0_46, %c0_47], %160 {strides = array<i32>} : memref<8x4x64xf32, #tpu.memory_space<vmem>>, vector<1x4x32xf32>,
    %161 = vector.extract_strided_slice %153 {offsets = [0, 32], sizes = [4, 32], strides = [1, 1]} : vector<4x64xf32> to vector<4x32xf32>
    %c4 = arith.constant 4 : index
    %c0_48 = arith.constant 0 : index
    %c32_49 = arith.constant 32 : index
    %162 = vector.load %arg6[%c4, %c0_48, %c32_49] : memref<8x4x64xf32, #tpu.memory_space<vmem>>, vector<1x4x32xf32>
    %163 = vector.shape_cast %162 : vector<1x4x32xf32> to vector<4x32xf32>
    %164 = vector.shape_cast %161 : vector<4x32xf32> to vector<1x4x32xf32>
    tpu.vector_store %arg6[%c4, %c0_48, %c32_49], %164 {strides = array<i32>} : memref<8x4x64xf32, #tpu.memory_space<vmem>>, vector<1x4x32xf32>,
    %165 = vector.extract_strided_slice %5 {offsets = [16, 0], sizes = [4, 192], strides = [1, 1]} : vector<32x192xf32> to vector<4x192xf32>
    %166 = arith.truncf %156 : vector<4x64xf32> to vector<4x64xbf16>
    %cst_50 = arith.constant dense<0.000000e+00> : vector<4x192xf32>
    %167 = tpu.matmul %166, %6, %cst_50 {dimension_numbers = #tpu.dot_dimension_numbers<[1], [0], [0], [1], [0, 0, 1, 1], [], []>} : vector<4x64xbf16>, vector<64x192xbf16>, vector<4x192xf32> -> vector<4x192xf32>
    %168 = vector.extract_strided_slice %165 {offsets = [0, 0], sizes = [4, 128], strides = [1, 1]} : vector<4x192xf32> to vector<4x128xf32>
    %169 = vector.extract_strided_slice %167 {offsets = [0, 0], sizes = [4, 128], strides = [1, 1]} : vector<4x192xf32> to vector<4x128xf32>
    %170 = arith.addf %168, %169 : vector<4x128xf32>
    %171 = arith.negf %170 : vector<4x128xf32>
    %172 = math.exp %171 : vector<4x128xf32>
    %cst_51 = arith.constant 1.000000e+00 : f32
    %173 = vector.broadcast %cst_51 : f32 to vector<4x128xf32>
    %174 = arith.addf %173, %172 : vector<4x128xf32>
    %175 = arith.divf %173, %174 : vector<4x128xf32>
    %176 = vector.extract_strided_slice %175 {offsets = [0, 0], sizes = [4, 64], strides = [1, 1]} : vector<4x128xf32> to vector<4x64xf32>
    %177 = vector.extract_strided_slice %175 {offsets = [0, 64], sizes = [4, 64], strides = [1, 1]} : vector<4x128xf32> to vector<4x64xf32>
    %178 = vector.extract_strided_slice %165 {offsets = [0, 128], sizes = [4, 64], strides = [1, 1]} : vector<4x192xf32> to vector<4x64xf32>
    %179 = vector.extract_strided_slice %167 {offsets = [0, 128], sizes = [4, 64], strides = [1, 1]} : vector<4x192xf32> to vector<4x64xf32>
    %180 = vector.broadcast %7 : vector<1x64xf32> to vector<4x64xf32>
    %181 = arith.addf %179, %180 : vector<4x64xf32>
    %182 = arith.mulf %176, %181 : vector<4x64xf32>
    %183 = arith.addf %178, %182 : vector<4x64xf32>
    %184 = math.tanh %183 : vector<4x64xf32>
    %cst_52 = arith.constant 1.000000e+00 : f32
    %185 = vector.broadcast %cst_52 : f32 to vector<4x64xf32>
    %186 = arith.subf %185, %177 : vector<4x64xf32>
    %187 = arith.mulf %186, %184 : vector<4x64xf32>
    %188 = arith.mulf %177, %156 : vector<4x64xf32>
    %189 = arith.addf %187, %188 : vector<4x64xf32>
    %c4_53 = arith.constant 4 : index
    %c0_54 = arith.constant 0 : index
    %c0_55 = arith.constant 0 : index
    %190 = vector.load %arg5[%c4_53, %c0_54, %c0_55] : memref<8x4x64xf32, #tpu.memory_space<vmem>>, vector<1x4x64xf32>
    %191 = vector.shape_cast %190 : vector<1x4x64xf32> to vector<4x64xf32>
    %192 = arith.mulf %191, %189 : vector<4x64xf32>
    %193 = arith.subf %189, %156 : vector<4x64xf32>
    %194 = arith.mulf %191, %193 : vector<4x64xf32>
    %195 = arith.addf %156, %194 : vector<4x64xf32>
    %196 = vector.extract_strided_slice %192 {offsets = [0, 0], sizes = [4, 32], strides = [1, 1]} : vector<4x64xf32> to vector<4x32xf32>
    %c4_56 = arith.constant 4 : index
    %c0_57 = arith.constant 0 : index
    %c0_58 = arith.constant 0 : index
    %197 = vector.load %arg6[%c4_56, %c0_57, %c0_58] : memref<8x4x64xf32, #tpu.memory_space<vmem>>, vector<1x4x32xf32>
    %198 = vector.shape_cast %197 : vector<1x4x32xf32> to vector<4x32xf32>
    %199 = vector.shape_cast %196 : vector<4x32xf32> to vector<1x4x32xf32>
    tpu.vector_store %arg6[%c4_56, %c0_57, %c0_58], %199 {strides = array<i32>} : memref<8x4x64xf32, #tpu.memory_space<vmem>>, vector<1x4x32xf32>,
    %200 = vector.extract_strided_slice %192 {offsets = [0, 32], sizes = [4, 32], strides = [1, 1]} : vector<4x64xf32> to vector<4x32xf32>
    %c3_59 = arith.constant 3 : index
    %c0_60 = arith.constant 0 : index
    %c32_61 = arith.constant 32 : index
    %201 = vector.load %arg6[%c3_59, %c0_60, %c32_61] : memref<8x4x64xf32, #tpu.memory_space<vmem>>, vector<1x4x32xf32>
    %202 = vector.shape_cast %201 : vector<1x4x32xf32> to vector<4x32xf32>
    %203 = vector.shape_cast %200 : vector<4x32xf32> to vector<1x4x32xf32>
    tpu.vector_store %arg6[%c3_59, %c0_60, %c32_61], %203 {strides = array<i32>} : memref<8x4x64xf32, #tpu.memory_space<vmem>>, vector<1x4x32xf32>,
    %204 = vector.extract_strided_slice %5 {offsets = [20, 0], sizes = [4, 192], strides = [1, 1]} : vector<32x192xf32> to vector<4x192xf32>
    %205 = arith.truncf %195 : vector<4x64xf32> to vector<4x64xbf16>
    %cst_62 = arith.constant dense<0.000000e+00> : vector<4x192xf32>
    %206 = tpu.matmul %205, %6, %cst_62 {dimension_numbers = #tpu.dot_dimension_numbers<[1], [0], [0], [1], [0, 0, 1, 1], [], []>} : vector<4x64xbf16>, vector<64x192xbf16>, vector<4x192xf32> -> vector<4x192xf32>
    %207 = vector.extract_strided_slice %204 {offsets = [0, 0], sizes = [4, 128], strides = [1, 1]} : vector<4x192xf32> to vector<4x128xf32>
    %208 = vector.extract_strided_slice %206 {offsets = [0, 0], sizes = [4, 128], strides = [1, 1]} : vector<4x192xf32> to vector<4x128xf32>
    %209 = arith.addf %207, %208 : vector<4x128xf32>
    %210 = arith.negf %209 : vector<4x128xf32>
    %211 = math.exp %210 : vector<4x128xf32>
    %cst_63 = arith.constant 1.000000e+00 : f32
    %212 = vector.broadcast %cst_63 : f32 to vector<4x128xf32>
    %213 = arith.addf %212, %211 : vector<4x128xf32>
    %214 = arith.divf %212, %213 : vector<4x128xf32>
    %215 = vector.extract_strided_slice %214 {offsets = [0, 0], sizes = [4, 64], strides = [1, 1]} : vector<4x128xf32> to vector<4x64xf32>
    %216 = vector.extract_strided_slice %214 {offsets = [0, 64], sizes = [4, 64], strides = [1, 1]} : vector<4x128xf32> to vector<4x64xf32>
    %217 = vector.extract_strided_slice %204 {offsets = [0, 128], sizes = [4, 64], strides = [1, 1]} : vector<4x192xf32> to vector<4x64xf32>
    %218 = vector.extract_strided_slice %206 {offsets = [0, 128], sizes = [4, 64], strides = [1, 1]} : vector<4x192xf32> to vector<4x64xf32>
    %219 = vector.broadcast %7 : vector<1x64xf32> to vector<4x64xf32>
    %220 = arith.addf %218, %219 : vector<4x64xf32>
    %221 = arith.mulf %215, %220 : vector<4x64xf32>
    %222 = arith.addf %217, %221 : vector<4x64xf32>
    %223 = math.tanh %222 : vector<4x64xf32>
    %cst_64 = arith.constant 1.000000e+00 : f32
    %224 = vector.broadcast %cst_64 : f32 to vector<4x64xf32>
    %225 = arith.subf %224, %216 : vector<4x64xf32>
    %226 = arith.mulf %225, %223 : vector<4x64xf32>
    %227 = arith.mulf %216, %195 : vector<4x64xf32>
    %228 = arith.addf %226, %227 : vector<4x64xf32>
    %c5_65 = arith.constant 5 : index
    %c0_66 = arith.constant 0 : index
    %c0_67 = arith.constant 0 : index
    %229 = vector.load %arg5[%c5_65, %c0_66, %c0_67] : memref<8x4x64xf32, #tpu.memory_space<vmem>>, vector<1x4x64xf32>
    %230 = vector.shape_cast %229 : vector<1x4x64xf32> to vector<4x64xf32>
    %231 = arith.mulf %230, %228 : vector<4x64xf32>
    %232 = arith.subf %228, %195 : vector<4x64xf32>
    %233 = arith.mulf %230, %232 : vector<4x64xf32>
    %234 = arith.addf %195, %233 : vector<4x64xf32>
    %235 = vector.extract_strided_slice %231 {offsets = [0, 0], sizes = [4, 32], strides = [1, 1]} : vector<4x64xf32> to vector<4x32xf32>
    %c5_68 = arith.constant 5 : index
    %c0_69 = arith.constant 0 : index
    %c0_70 = arith.constant 0 : index
    %236 = vector.load %arg6[%c5_68, %c0_69, %c0_70] : memref<8x4x64xf32, #tpu.memory_space<vmem>>, vector<1x4x32xf32>
    %237 = vector.shape_cast %236 : vector<1x4x32xf32> to vector<4x32xf32>
    %238 = vector.shape_cast %235 : vector<4x32xf32> to vector<1x4x32xf32>
    tpu.vector_store %arg6[%c5_68, %c0_69, %c0_70], %238 {strides = array<i32>} : memref<8x4x64xf32, #tpu.memory_space<vmem>>, vector<1x4x32xf32>,
    %239 = vector.extract_strided_slice %231 {offsets = [0, 32], sizes = [4, 32], strides = [1, 1]} : vector<4x64xf32> to vector<4x32xf32>
    %c2_71 = arith.constant 2 : index
    %c0_72 = arith.constant 0 : index
    %c32_73 = arith.constant 32 : index
    %240 = vector.load %arg6[%c2_71, %c0_72, %c32_73] : memref<8x4x64xf32, #tpu.memory_space<vmem>>, vector<1x4x32xf32>
    %241 = vector.shape_cast %240 : vector<1x4x32xf32> to vector<4x32xf32>
    %242 = vector.shape_cast %239 : vector<4x32xf32> to vector<1x4x32xf32>
    tpu.vector_store %arg6[%c2_71, %c0_72, %c32_73], %242 {strides = array<i32>} : memref<8x4x64xf32, #tpu.memory_space<vmem>>, vector<1x4x32xf32>,
    %243 = vector.extract_strided_slice %5 {offsets = [24, 0], sizes = [4, 192], strides = [1, 1]} : vector<32x192xf32> to vector<4x192xf32>
    %244 = arith.truncf %234 : vector<4x64xf32> to vector<4x64xbf16>
    %cst_74 = arith.constant dense<0.000000e+00> : vector<4x192xf32>
    %245 = tpu.matmul %244, %6, %cst_74 {dimension_numbers = #tpu.dot_dimension_numbers<[1], [0], [0], [1], [0, 0, 1, 1], [], []>} : vector<4x64xbf16>, vector<64x192xbf16>, vector<4x192xf32> -> vector<4x192xf32>
    %246 = vector.extract_strided_slice %243 {offsets = [0, 0], sizes = [4, 128], strides = [1, 1]} : vector<4x192xf32> to vector<4x128xf32>
    %247 = vector.extract_strided_slice %245 {offsets = [0, 0], sizes = [4, 128], strides = [1, 1]} : vector<4x192xf32> to vector<4x128xf32>
    %248 = arith.addf %246, %247 : vector<4x128xf32>
    %249 = arith.negf %248 : vector<4x128xf32>
    %250 = math.exp %249 : vector<4x128xf32>
    %cst_75 = arith.constant 1.000000e+00 : f32
    %251 = vector.broadcast %cst_75 : f32 to vector<4x128xf32>
    %252 = arith.addf %251, %250 : vector<4x128xf32>
    %253 = arith.divf %251, %252 : vector<4x128xf32>
    %254 = vector.extract_strided_slice %253 {offsets = [0, 0], sizes = [4, 64], strides = [1, 1]} : vector<4x128xf32> to vector<4x64xf32>
    %255 = vector.extract_strided_slice %253 {offsets = [0, 64], sizes = [4, 64], strides = [1, 1]} : vector<4x128xf32> to vector<4x64xf32>
    %256 = vector.extract_strided_slice %243 {offsets = [0, 128], sizes = [4, 64], strides = [1, 1]} : vector<4x192xf32> to vector<4x64xf32>
    %257 = vector.extract_strided_slice %245 {offsets = [0, 128], sizes = [4, 64], strides = [1, 1]} : vector<4x192xf32> to vector<4x64xf32>
    %258 = vector.broadcast %7 : vector<1x64xf32> to vector<4x64xf32>
    %259 = arith.addf %257, %258 : vector<4x64xf32>
    %260 = arith.mulf %254, %259 : vector<4x64xf32>
    %261 = arith.addf %256, %260 : vector<4x64xf32>
    %262 = math.tanh %261 : vector<4x64xf32>
    %cst_76 = arith.constant 1.000000e+00 : f32
    %263 = vector.broadcast %cst_76 : f32 to vector<4x64xf32>
    %264 = arith.subf %263, %255 : vector<4x64xf32>
    %265 = arith.mulf %264, %262 : vector<4x64xf32>
    %266 = arith.mulf %255, %234 : vector<4x64xf32>
    %267 = arith.addf %265, %266 : vector<4x64xf32>
    %c6_77 = arith.constant 6 : index
    %c0_78 = arith.constant 0 : index
    %c0_79 = arith.constant 0 : index
    %268 = vector.load %arg5[%c6_77, %c0_78, %c0_79] : memref<8x4x64xf32, #tpu.memory_space<vmem>>, vector<1x4x64xf32>
    %269 = vector.shape_cast %268 : vector<1x4x64xf32> to vector<4x64xf32>
    %270 = arith.mulf %269, %267 : vector<4x64xf32>
    %271 = arith.subf %267, %234 : vector<4x64xf32>
    %272 = arith.mulf %269, %271 : vector<4x64xf32>
    %273 = arith.addf %234, %272 : vector<4x64xf32>
    %274 = vector.extract_strided_slice %270 {offsets = [0, 0], sizes = [4, 32], strides = [1, 1]} : vector<4x64xf32> to vector<4x32xf32>
    %c6_80 = arith.constant 6 : index
    %c0_81 = arith.constant 0 : index
    %c0_82 = arith.constant 0 : index
    %275 = vector.load %arg6[%c6_80, %c0_81, %c0_82] : memref<8x4x64xf32, #tpu.memory_space<vmem>>, vector<1x4x32xf32>
    %276 = vector.shape_cast %275 : vector<1x4x32xf32> to vector<4x32xf32>
    %277 = vector.shape_cast %274 : vector<4x32xf32> to vector<1x4x32xf32>
    tpu.vector_store %arg6[%c6_80, %c0_81, %c0_82], %277 {strides = array<i32>} : memref<8x4x64xf32, #tpu.memory_space<vmem>>, vector<1x4x32xf32>,
    %278 = vector.extract_strided_slice %270 {offsets = [0, 32], sizes = [4, 32], strides = [1, 1]} : vector<4x64xf32> to vector<4x32xf32>
    %c1_83 = arith.constant 1 : index
    %c0_84 = arith.constant 0 : index
    %c32_85 = arith.constant 32 : index
    %279 = vector.load %arg6[%c1_83, %c0_84, %c32_85] : memref<8x4x64xf32, #tpu.memory_space<vmem>>, vector<1x4x32xf32>
    %280 = vector.shape_cast %279 : vector<1x4x32xf32> to vector<4x32xf32>
    %281 = vector.shape_cast %278 : vector<4x32xf32> to vector<1x4x32xf32>
    tpu.vector_store %arg6[%c1_83, %c0_84, %c32_85], %281 {strides = array<i32>} : memref<8x4x64xf32, #tpu.memory_space<vmem>>, vector<1x4x32xf32>,
    %282 = vector.extract_strided_slice %5 {offsets = [28, 0], sizes = [4, 192], strides = [1, 1]} : vector<32x192xf32> to vector<4x192xf32>
    %283 = arith.truncf %273 : vector<4x64xf32> to vector<4x64xbf16>
    %cst_86 = arith.constant dense<0.000000e+00> : vector<4x192xf32>
    %284 = tpu.matmul %283, %6, %cst_86 {dimension_numbers = #tpu.dot_dimension_numbers<[1], [0], [0], [1], [0, 0, 1, 1], [], []>} : vector<4x64xbf16>, vector<64x192xbf16>, vector<4x192xf32> -> vector<4x192xf32>
    %285 = vector.extract_strided_slice %282 {offsets = [0, 0], sizes = [4, 128], strides = [1, 1]} : vector<4x192xf32> to vector<4x128xf32>
    %286 = vector.extract_strided_slice %284 {offsets = [0, 0], sizes = [4, 128], strides = [1, 1]} : vector<4x192xf32> to vector<4x128xf32>
    %287 = arith.addf %285, %286 : vector<4x128xf32>
    %288 = arith.negf %287 : vector<4x128xf32>
    %289 = math.exp %288 : vector<4x128xf32>
    %cst_87 = arith.constant 1.000000e+00 : f32
    %290 = vector.broadcast %cst_87 : f32 to vector<4x128xf32>
    %291 = arith.addf %290, %289 : vector<4x128xf32>
    %292 = arith.divf %290, %291 : vector<4x128xf32>
    %293 = vector.extract_strided_slice %292 {offsets = [0, 0], sizes = [4, 64], strides = [1, 1]} : vector<4x128xf32> to vector<4x64xf32>
    %294 = vector.extract_strided_slice %292 {offsets = [0, 64], sizes = [4, 64], strides = [1, 1]} : vector<4x128xf32> to vector<4x64xf32>
    %295 = vector.extract_strided_slice %282 {offsets = [0, 128], sizes = [4, 64], strides = [1, 1]} : vector<4x192xf32> to vector<4x64xf32>
    %296 = vector.extract_strided_slice %284 {offsets = [0, 128], sizes = [4, 64], strides = [1, 1]} : vector<4x192xf32> to vector<4x64xf32>
    %297 = vector.broadcast %7 : vector<1x64xf32> to vector<4x64xf32>
    %298 = arith.addf %296, %297 : vector<4x64xf32>
    %299 = arith.mulf %293, %298 : vector<4x64xf32>
    %300 = arith.addf %295, %299 : vector<4x64xf32>
    %301 = math.tanh %300 : vector<4x64xf32>
    %cst_88 = arith.constant 1.000000e+00 : f32
    %302 = vector.broadcast %cst_88 : f32 to vector<4x64xf32>
    %303 = arith.subf %302, %294 : vector<4x64xf32>
    %304 = arith.mulf %303, %301 : vector<4x64xf32>
    %305 = arith.mulf %294, %273 : vector<4x64xf32>
    %306 = arith.addf %304, %305 : vector<4x64xf32>
    %c7_89 = arith.constant 7 : index
    %c0_90 = arith.constant 0 : index
    %c0_91 = arith.constant 0 : index
    %307 = vector.load %arg5[%c7_89, %c0_90, %c0_91] : memref<8x4x64xf32, #tpu.memory_space<vmem>>, vector<1x4x64xf32>
    %308 = vector.shape_cast %307 : vector<1x4x64xf32> to vector<4x64xf32>
    %309 = arith.mulf %308, %306 : vector<4x64xf32>
    %310 = arith.subf %306, %273 : vector<4x64xf32>
    %311 = arith.mulf %308, %310 : vector<4x64xf32>
    %312 = arith.addf %273, %311 : vector<4x64xf32>
    %313 = vector.extract_strided_slice %309 {offsets = [0, 0], sizes = [4, 32], strides = [1, 1]} : vector<4x64xf32> to vector<4x32xf32>
    %c7_92 = arith.constant 7 : index
    %c0_93 = arith.constant 0 : index
    %c0_94 = arith.constant 0 : index
    %314 = vector.load %arg6[%c7_92, %c0_93, %c0_94] : memref<8x4x64xf32, #tpu.memory_space<vmem>>, vector<1x4x32xf32>
    %315 = vector.shape_cast %314 : vector<1x4x32xf32> to vector<4x32xf32>
    %316 = vector.shape_cast %313 : vector<4x32xf32> to vector<1x4x32xf32>
    tpu.vector_store %arg6[%c7_92, %c0_93, %c0_94], %316 {strides = array<i32>} : memref<8x4x64xf32, #tpu.memory_space<vmem>>, vector<1x4x32xf32>,
    %317 = vector.extract_strided_slice %309 {offsets = [0, 32], sizes = [4, 32], strides = [1, 1]} : vector<4x64xf32> to vector<4x32xf32>
    %c0_95 = arith.constant 0 : index
    %c0_96 = arith.constant 0 : index
    %c32_97 = arith.constant 32 : index
    %318 = vector.load %arg6[%c0_95, %c0_96, %c32_97] : memref<8x4x64xf32, #tpu.memory_space<vmem>>, vector<1x4x32xf32>
    %319 = vector.shape_cast %318 : vector<1x4x32xf32> to vector<4x32xf32>
    %320 = vector.shape_cast %317 : vector<4x32xf32> to vector<1x4x32xf32>
    tpu.vector_store %arg6[%c0_95, %c0_96, %c32_97], %320 {strides = array<i32>} : memref<8x4x64xf32, #tpu.memory_space<vmem>>, vector<1x4x32xf32>,
    %c0_98 = arith.constant 0 : index
    %c0_99 = arith.constant 0 : index
    %321 = vector.load %arg7[%c0_98, %c0_99] : memref<4x64xf32, #tpu.memory_space<vmem>>, vector<4x64xf32>
    tpu.vector_store %arg7[%c0_98, %c0_99], %312 {strides = array<i32>} : memref<4x64xf32, #tpu.memory_space<vmem>>, vector<4x64xf32>,
    return
  }
}

</mosaic_0001>

<llo_original>
// kernel: tpu_custom_call.1
$region0: #{tpu_custom_call.1}
  #allocation0 [shape = 'u32[]', space=smem, size = 0x4, offset = 0x4, fixed_abs, tag = 'smem constant byte address 0x4 - core index']
  #allocation1 [shape = 'u32[72,128]{1,0:T(1,128)}', space=vmem, size = 0x9000, scoped, tag = 'internal scratch']
  %s0 = inlined_call_operand.hbm [shape: f32[32,32], index: 0, kind: input, shape index: {}]
  %s1 = inlined_call_operand.hbm [shape: f32[32,192], index: 1, kind: input, shape index: {}]
  %s2 = inlined_call_operand.hbm [shape: f32[1,192], index: 2, kind: input, shape index: {}]
  %s3 = inlined_call_operand.hbm [shape: bf16[64,192], index: 3, kind: input, shape index: {}]
  %s4 = inlined_call_operand.vmem [shape: f32[1,64], index: 4, kind: input, shape index: {}]
  %s5 = inlined_call_operand.hbm [shape: f32[8,4,64], index: 5, kind: input, shape index: {}]
  %s6 = inlined_call_operand.hbm [shape: f32[8,4,64], index: 6, kind: output, shape index: {0}]
  %s7 = inlined_call_operand.hbm [shape: f32[4,64], index: 7, kind: output, shape index: {1}]
  %8 = xla_tuple %s6, %s7
  %s9 = sld [smem:[#allocation0]]
  $region62: #{tpu_custom_call.1} parent=0
    _
  %s11 = ssub.s32 1, %s9
  %s12 = scalar_select 0, %s11, %s9
  $region1: #{tpu_custom_call.1} parent=0
    #allocation2 [shape = 'u8[16384]{0}', space=vmem, size = 0x4000, scoped, tag = 'input window, operand 0, single buffered']
    #allocation3 [shape = 's32[1]{0}', space=sflag, size = 0x4, scoped, tag = 'scoped memory for tpu_custom_call.1']
    #allocation4 [shape = 's32[1]{0}', space=sflag, size = 0x4, scoped, tag = 'scoped memory for tpu_custom_call.1']
    #allocation5 [shape = 'u8[32768]{0}', space=vmem, size = 0x8000, scoped, tag = 'input window, operand 1, single buffered']
    #allocation6 [shape = 's32[1]{0}', space=sflag, size = 0x4, scoped, tag = 'scoped memory for tpu_custom_call.1']
    #allocation7 [shape = 'u8[1024]{0}', space=vmem, size = 0x400, scoped, tag = 'input window, operand 2, single buffered']
    #allocation8 [shape = 'u8[32768]{0}', space=vmem, size = 0x8000, scoped, tag = 'input window, operand 3, single buffered']
    #allocation9 [shape = 's32[1]{0}', space=sflag, size = 0x4, scoped, tag = 'scoped memory for tpu_custom_call.1']
    #allocation10 [shape = 'u8[16384]{0}', space=vmem, size = 0x4000, scoped, tag = 'input window, operand 5, single buffered']
    #allocation11 [shape = 'u8[16384]{0}', space=vmem, size = 0x4000, scoped, tag = 'output window, operand 0, single buffered']
    #allocation12 [shape = 'u8[2048]{0}', space=vmem, size = 0x800, scoped, tag = 'output window, operand 1, single buffered']
    #allocation13 [shape = 's32[1]{0}', space=sflag, size = 0x4, scoped, tag = 'scoped memory for tpu_custom_call.1']
    %13 = vsyncpa [#allocation3], 0
    %14 = vsyncpa [#allocation6], 0
    %15 = vsyncpa [#allocation9], 0
    %16 = vsyncpa [#allocation4], 0
    %17 = vsyncpa [#allocation13], 0
    // Predicated region
    $region2: #{tpu_custom_call.1} parent=1 // pred_check
      _
    $region3: #{tpu_custom_call.1} parent=1 // pred_check_branch
      %19 = sbr.rel (0) target = $region5
    $region4: #{tpu_custom_call.1} parent=1 // pred_region
      %21 = vsyncadd [#allocation3], 0
      %s22 = sshll.u32 %s0, 4
      %s23 = int_to_ptr.hbm [resolvable:$true] %s22
      %s24 = sshll.u32 [#allocation2], 4
      %s25 = int_to_ptr.vmem [resolvable:$true] %s24
      %30 = dma.hbm_to_vmem [thread:$0]  %s23, 512, %s25, [#allocation3], 128, 128, 8
    $region5: #{tpu_custom_call.1} parent=1 // pred_fallthru
      _
    // Predicated region
    $region6: #{tpu_custom_call.1} parent=1 // pred_check
      _
    $region7: #{tpu_custom_call.1} parent=1 // pred_check_branch
      %32 = sbr.rel (0) target = $region9
    $region8: #{tpu_custom_call.1} parent=1 // pred_region
      %34 = vsyncadd [#allocation6], 0
      %s35 = sshll.u32 %s1, 4
      %s36 = int_to_ptr.hbm [resolvable:$true] %s35
      %s37 = sshll.u32 [#allocation5], 4
      %s38 = int_to_ptr.vmem [resolvable:$true] %s37
      %43 = dma.hbm_to_vmem [thread:$0]  %s36, 1024, %s38, [#allocation6], 256, 256, 16
    $region9: #{tpu_custom_call.1} parent=1 // pred_fallthru
      _
    // Predicated region
    $region10: #{tpu_custom_call.1} parent=1 // pred_check
      _
    $region11: #{tpu_custom_call.1} parent=1 // pred_check_branch
      %45 = sbr.rel (0) target = $region13
    $region12: #{tpu_custom_call.1} parent=1 // pred_region
      %47 = vsyncadd [#allocation6], 0
      %s49 = sshll.u32 %s2, 4
      %s50 = int_to_ptr.hbm [resolvable:$true] %s49
      %s51 = sshll.u32 [#allocation7], 4
      %s52 = int_to_ptr.vmem [resolvable:$true] %s51
      %54 = dma.hbm_to_vmem [thread:$0]  %s50, 32, %s52, [#allocation6]
    $region13: #{tpu_custom_call.1} parent=1 // pred_fallthru
      _
    // Predicated region
    $region14: #{tpu_custom_call.1} parent=1 // pred_check
      _
    $region15: #{tpu_custom_call.1} parent=1 // pred_check_branch
      %56 = sbr.rel (0) target = $region17
    $region16: #{tpu_custom_call.1} parent=1 // pred_region
      %58 = vsyncadd [#allocation9], 0
      %s59 = sshll.u32 %s3, 4
      %s60 = int_to_ptr.hbm [resolvable:$true] %s59
      %s61 = sshll.u32 [#allocation8], 4
      %s62 = int_to_ptr.vmem [resolvable:$true] %s61
      %67 = dma.hbm_to_vmem [thread:$0]  %s60, 1024, %s62, [#allocation9], 128, 128, 8
    $region17: #{tpu_custom_call.1} parent=1 // pred_fallthru
      _
    // Predicated region
    $region18: #{tpu_custom_call.1} parent=1 // pred_check
      _
    $region19: #{tpu_custom_call.1} parent=1 // pred_check_branch
      %69 = sbr.rel (0) target = $region21
    $region20: #{tpu_custom_call.1} parent=1 // pred_region
      _
    $region21: #{tpu_custom_call.1} parent=1 // pred_fallthru
      _
    // Predicated region
    $region22: #{tpu_custom_call.1} parent=1 // pred_check
      _
    $region23: #{tpu_custom_call.1} parent=1 // pred_check_branch
      %71 = sbr.rel (0) target = $region25
    $region24: #{tpu_custom_call.1} parent=1 // pred_region
      %73 = vsyncadd [#allocation9], 0
      %s74 = sshll.u32 %s5, 4
      %s75 = int_to_ptr.hbm [resolvable:$true] %s74
      %s76 = sshll.u32 [#allocation10], 4
      %s77 = int_to_ptr.vmem [resolvable:$true] %s76
      %82 = dma.hbm_to_vmem [thread:$0]  %s75, 512, %s77, [#allocation9], 64, 64, 4
    $region25: #{tpu_custom_call.1} parent=1 // pred_fallthru
      _
    // Predicated region
    $region26: #{tpu_custom_call.1} parent=1 // pred_check
      _
    $region27: #{tpu_custom_call.1} parent=1 // pred_check_branch
      %84 = sbr.rel (0) target = $region29
    $region28: #{tpu_custom_call.1} parent=1 // pred_region
      %86 = dma.done [#allocation3], 512
    $region29: #{tpu_custom_call.1} parent=1 // pred_fallthru
      _
    // Predicated region
    $region30: #{tpu_custom_call.1} parent=1 // pred_check
      _
    $region31: #{tpu_custom_call.1} parent=1 // pred_check_branch
      %88 = sbr.rel (0) target = $region33
    $region32: #{tpu_custom_call.1} parent=1 // pred_region
      %90 = dma.done [#allocation6], 1024
    $region33: #{tpu_custom_call.1} parent=1 // pred_fallthru
      _
    // Predicated region
    $region34: #{tpu_custom_call.1} parent=1 // pred_check
      _
    $region35: #{tpu_custom_call.1} parent=1 // pred_check_branch
      %92 = sbr.rel (0) target = $region37
    $region36: #{tpu_custom_call.1} parent=1 // pred_region
      %94 = dma.done [#allocation6], 32
    $region37: #{tpu_custom_call.1} parent=1 // pred_fallthru
      _
    // Predicated region
    $region38: #{tpu_custom_call.1} parent=1 // pred_check
      _
    $region39: #{tpu_custom_call.1} parent=1 // pred_check_branch
      %96 = sbr.rel (0) target = $region41
    $region40: #{tpu_custom_call.1} parent=1 // pred_region
      %98 = dma.done [#allocation9], 1024
    $region41: #{tpu_custom_call.1} parent=1 // pred_fallthru
      _
    // Predicated region
    $region42: #{tpu_custom_call.1} parent=1 // pred_check
      _
    $region43: #{tpu_custom_call.1} parent=1 // pred_check_branch
      %100 = sbr.rel (0) target = $region45
    $region44: #{tpu_custom_call.1} parent=1 // pred_region
      %102 = dma.done [#allocation9], 512
    $region45: #{tpu_custom_call.1} parent=1 // pred_fallthru
      _
    %v104 = vld [vmem:[#allocation2] sm:$0xff]
    %v105 = vld [vmem:[#allocation2 + $0x8] sm:$0xff]
    %v106 = vld [vmem:[#allocation2 + $0x10] sm:$0xff]
    %v107 = vld [vmem:[#allocation2 + $0x18] sm:$0xff]
    %v108 = vld [vmem:[#allocation5] sm:$0xff]
    %v109 = vld [vmem:[#allocation5 + $0x8] sm:$0xff]
    %v110 = vld [vmem:[#allocation5 + $0x10] sm:$0xff]
    %v111 = vld [vmem:[#allocation5 + $0x18] sm:$0xff]
    %v112 = vld [vmem:[#allocation5 + $0x20] sm:$0xff]
    %v113 = vld [vmem:[#allocation5 + $0x28] sm:$0xff]
    %v114 = vld [vmem:[#allocation5 + $0x30] sm:$0xff]
    %v115 = vld [vmem:[#allocation5 + $0x38] sm:$0xff]
    %v116 = vld [vmem:[#allocation7] sm:$0x3]
    %v118 = vperm.slane %v116, 0
    %v119 = vperm.slane %v116, 1
    %vm122 = vcmask 261120
    %v124 = vsel %vm122, %v104, 0
    %v127 = vsel %vm122, %v105, 0
    %v130 = vsel %vm122, %v106, 0
    %v133 = vsel %vm122, %v107, 0
    %135 = vmatpush.msra.mxu0 0.0
    %136 = vmatpush.msra.mxu0 0.0
    %137 = vmatpush.msra.mxu0 0.0
    %138 = vmatpush.msra.mxu0 0.0
    %139 = vmatpush.msra.mxu0 0.0
    %140 = vmatpush.msra.mxu0 0.0
    %141 = vmatpush.msra.mxu0 0.0
    %142 = vmatpush.msra.mxu0 0.0
    %143 = vmatpush.msra.mxu0 0.0
    %144 = vmatpush.msra.mxu0 0.0
    %145 = vmatpush.msra.mxu0 0.0
    %146 = vmatpush.msra.mxu0 0.0
    %147 = vmatpush.msra.mxu0 %v114
    %148 = vmatpush.msra.mxu0 %v112
    %149 = vmatpush.msra.mxu0 %v110
    %150 = vmatpush.msra.mxu0 %v108
    %151 = vmatmul.f32.gmra.mxu0 %v124
    %v152 = vpop.f32.mrf.mxu0
    %v153 = vadd.f32 %v118, %v152
    %154 = vmatmul.f32.gmra.mxu0 %v127
    %v155 = vpop.f32.mrf.mxu0
    %v156 = vadd.f32 %v118, %v155
    %157 = vmatmul.f32.gmra.mxu0 %v130
    %v158 = vpop.f32.mrf.mxu0
    %v159 = vadd.f32 %v118, %v158
    %160 = vmatmul.f32.gmra.mxu0 %v133
    %v161 = vpop.f32.mrf.mxu0
    %v162 = vadd.f32 %v118, %v161
    %163 = vdwg.mxu0
    %164 = vmatpush.msra.mxu0 0.0
    %165 = vmatpush.msra.mxu0 0.0
    %166 = vmatpush.msra.mxu0 0.0
    %167 = vmatpush.msra.mxu0 0.0
    %168 = vmatpush.msra.mxu0 0.0
    %169 = vmatpush.msra.mxu0 0.0
    %170 = vmatpush.msra.mxu0 0.0
    %171 = vmatpush.msra.mxu0 0.0
    %172 = vmatpush.msra.mxu0 0.0
    %173 = vmatpush.msra.mxu0 0.0
    %174 = vmatpush.msra.mxu0 0.0
    %175 = vmatpush.msra.mxu0 0.0
    %176 = vmatpush.msra.mxu0 %v115
    %177 = vmatpush.msra.mxu0 %v113
    %178 = vmatpush.msra.mxu0 %v111
    %179 = vmatpush.msra.mxu0 %v109
    %180 = vmatmul.f32.gmra.mxu0 %v124
    %v181 = vpop.f32.mrf.mxu0
    %v182 = vadd.f32 %v119, %v181
    %183 = vmatmul.f32.gmra.mxu0 %v127
    %v184 = vpop.f32.mrf.mxu0
    %v185 = vadd.f32 %v119, %v184
    %186 = vmatmul.f32.gmra.mxu0 %v130
    %v187 = vpop.f32.mrf.mxu0
    %v188 = vadd.f32 %v119, %v187
    %189 = vmatmul.f32.gmra.mxu0 %v133
    %v190 = vpop.f32.mrf.mxu0
    %v191 = vadd.f32 %v119, %v190
    %192 = vdwg.mxu0
    %v193 = vld [vmem:[#allocation8] sm:$0xff]
    %v194 = vld [vmem:[#allocation8 + $0x8] sm:$0xff]
    %v195 = vld [vmem:[#allocation8 + $0x10] sm:$0xff]
    %v196 = vld [vmem:[#allocation8 + $0x18] sm:$0xff]
    %v197 = vld [vmem:[#allocation8 + $0x20] sm:$0xff]
    %v198 = vld [vmem:[#allocation8 + $0x28] sm:$0xff]
    %v199 = vld [vmem:[#allocation8 + $0x30] sm:$0xff]
    %v200 = vld [vmem:[#allocation8 + $0x38] sm:$0xff]
    %v201 = vld [vmem:[%s4] sm:$0x1]
    %v210 = vunpack.c.l.b16 %v193
    %v211 = vunpack.c.h.b16 %v193
    %v212 = vunpack.c.l.b16 %v194
    %v213 = vunpack.c.h.b16 %v194
    %v214 = vunpack.c.l.b16 %v195
    %v215 = vunpack.c.h.b16 %v195
    %v216 = vunpack.c.l.b16 %v196
    %v217 = vunpack.c.h.b16 %v196
    %v218 = vunpack.c.l.b16 %v197
    %v219 = vunpack.c.h.b16 %v197
    %v220 = vunpack.c.l.b16 %v198
    %v221 = vunpack.c.h.b16 %v198
    %v222 = vunpack.c.l.b16 %v199
    %v223 = vunpack.c.h.b16 %v199
    %v224 = vunpack.c.l.b16 %v200
    %v225 = vunpack.c.h.b16 %v200
    %v226 = vpack.c.b16 %v212, %v210
    %v227 = vpack.c.b16 %v213, %v211
    %v228 = vpack.c.b16 %v216, %v214
    %v229 = vpack.c.b16 %v217, %v215
    %v230 = vpack.c.b16 %v220, %v218
    %v231 = vpack.c.b16 %v221, %v219
    %v232 = vpack.c.b16 %v224, %v222
    %v233 = vpack.c.b16 %v225, %v223
    %vm242 = vcmask 523264
    %v244 = vsel %vm242, 0, 0
    %246 = vmatpush.bf16.msra.mxu0 0
    %247 = vmatpush.bf16.msra.mxu0 0
    %248 = vmatpush.bf16.msra.mxu0 0
    %249 = vmatpush.bf16.msra.mxu0 0
    %250 = vmatpush.bf16.msra.mxu0 %v232
    %251 = vmatpush.bf16.msra.mxu0 %v230
    %252 = vmatpush.bf16.msra.mxu0 %v228
    %253 = vmatpush.bf16.msra.mxu0 %v226
    %254 = vmatmul.bf16.gmra.mxu0 %v244
    %v255 = vpop.f32.mrf.mxu0
    %v256 = vadd.f32 0.0, %v255
    %v257 = vpop.f32.mrf.mxu0
    %258 = vdwg.mxu0
    %259 = vmatpush.bf16.msra.mxu0 0
    %260 = vmatpush.bf16.msra.mxu0 0
    %261 = vmatpush.bf16.msra.mxu0 0
    %262 = vmatpush.bf16.msra.mxu0 0
    %263 = vmatpush.bf16.msra.mxu0 %v233
    %264 = vmatpush.bf16.msra.mxu0 %v231
    %265 = vmatpush.bf16.msra.mxu0 %v229
    %266 = vmatpush.bf16.msra.mxu0 %v227
    %267 = vmatmul.bf16.gmra.mxu0 %v244
    %v268 = vpop.f32.mrf.mxu0
    %v269 = vadd.f32 0.0, %v268
    %v270 = vpop.f32.mrf.mxu0
    %271 = vdwg.mxu0
    %v272 = vadd.f32 %v153, %v256
    %v273 = vxor.u32 %v272, 2147483648
    %v274 = vmul.f32 %v273, 1.442695
    %v275 = vpow.pop %v274
    %v276 = vadd.f32 %v275, 1.0
    %v277 = vrcp.pop %v276
    %v278 = vmul.f32 %v276, %v277
    %v279 = vsub.f32 1.0, %v278
    %v280 = vmul.f32 %v277, %v279
    %v281 = vadd.f32 %v277, %v280
    %vm282 = vweird.f32 %v276
    %vm283 = vweird.f32 %v277
    %vm284 = vmor %vm282, %vm283
    %v285 = vsel %vm284, %v277, %v281
    %v286 = vand.u32 2147483647, %v276
    %vm287 = vcmp.eq.f32.partialorder %v286, 8.507059e+37
    %v288 = vand.u32 %v276, 2147483648
    %v289 = vor.u32 1.1754944e-38, %v288
    %v290 = vsel %vm287, %v289, %v285
    %v291 = vmul.f32 1.0, %v290
    %v293 = vperm.slane %v201, 0
    %v295 = vadd.f32 %v269, %v293
    %v296 = vmul.f32 %v291, %v295
    %v297 = vadd.f32 %v182, %v296
    %v298 = vtanh.pop %v297
    %v299 = vsub.f32 1.0, %v291
    %301 = vrot.lane.b32.xlu0 %v298, 64
    %v302 = vpop.permute.xlu0 %301
    %v304 = vmul.f32 %v299, %v302
    %v305 = vmul.f32 %v291, 0.0
    %v306 = vadd.f32 %v304, %v305
    %v307 = vld [vmem:[#allocation10] sm:$0xf]
    %309 = vrot.lane.b32.xlu0 %v306, 64
    %v310 = vpop.permute.xlu0 %309
    %v312 = vmul.f32 %v307, %v310
    %v313 = vadd.f32 %v312, 0.0
    %vm314 = vcmask 257024
    %315 = vst.msk [vmem:[#allocation11] sm:$0xf] %vm314, %v312
    %s316 = scalar_lea.vmem [#allocation11], 28
    %vm317 = vcmask 519424
    %318 = vst.msk [vmem:[%s316] sm:$0xf] %vm317, %v312
    %v319 = vpack.c.bf16 %v313, %v313
    %v321 = vsel %vm242, %v319, 0
    %323 = vmatpush.bf16.msra.mxu0 0
    %324 = vmatpush.bf16.msra.mxu0 0
    %325 = vmatpush.bf16.msra.mxu0 0
    %326 = vmatpush.bf16.msra.mxu0 0
    %327 = vmatpush.bf16.msra.mxu0 %v232
    %328 = vmatpush.bf16.msra.mxu0 %v230
    %329 = vmatpush.bf16.msra.mxu0 %v228
    %330 = vmatpush.bf16.msra.mxu0 %v226
    %331 = vmatmul.bf16.gmra.mxu0 %v321
    %v332 = vpop.f32.mrf.mxu0
    %v333 = vadd.f32 0.0, %v332
    %v334 = vpop.f32.mrf.mxu0
    %335 = vdwg.mxu0
    %336 = vmatpush.bf16.msra.mxu0 0
    %337 = vmatpush.bf16.msra.mxu0 0
    %338 = vmatpush.bf16.msra.mxu0 0
    %339 = vmatpush.bf16.msra.mxu0 0
    %340 = vmatpush.bf16.msra.mxu0 %v233
    %341 = vmatpush.bf16.msra.mxu0 %v231
    %342 = vmatpush.bf16.msra.mxu0 %v229
    %343 = vmatpush.bf16.msra.mxu0 %v227
    %344 = vmatmul.bf16.gmra.mxu0 %v321
    %v345 = vpop.f32.mrf.mxu0
    %v346 = vadd.f32 0.0, %v345
    %v347 = vpop.f32.mrf.mxu0
    %348 = vdwg.mxu0
    %v350 = vrot.slane %v333, 4
    %v352 = vadd.f32 %v153, %v350
    %v353 = vxor.u32 %v352, 2147483648
    %v354 = vmul.f32 %v353, 1.442695
    %v355 = vpow.pop %v354
    %v356 = vadd.f32 %v355, 1.0
    %v357 = vrcp.pop %v356
    %v358 = vmul.f32 %v356, %v357
    %v359 = vsub.f32 1.0, %v358
    %v360 = vmul.f32 %v357, %v359
    %v361 = vadd.f32 %v357, %v360
    %vm362 = vweird.f32 %v356
    %vm363 = vweird.f32 %v357
    %vm364 = vmor %vm362, %vm363
    %v365 = vsel %vm364, %v357, %v361
    %v366 = vand.u32 2147483647, %v356
    %vm367 = vcmp.eq.f32.partialorder %v366, 8.507059e+37
    %v368 = vand.u32 %v356, 2147483648
    %v369 = vor.u32 1.1754944e-38, %v368
    %v370 = vsel %vm367, %v369, %v365
    %v371 = vmul.f32 1.0, %v370
    %v372 = vadd.f32 %v346, %v293
    %v374 = vrot.slane %v372, 4
    %v376 = vmul.f32 %v371, %v374
    %v377 = vadd.f32 %v182, %v376
    %v378 = vtanh.pop %v377
    %v379 = vsub.f32 1.0, %v371
    %381 = vrot.lane.b32.xlu0 %v378, 64
    %v382 = vpop.permute.xlu0 %381
    %v384 = vmul.f32 %v379, %v382
    %v386 = vrot.slane %v313, 4
    %387 = vrot.lane.b32.xlu0 %v386, 64
    %v388 = vpop.permute.xlu0 %387
    %v390 = vmul.f32 %v371, %v388
    %v391 = vadd.f32 %v384, %v390
    %s392 = scalar_lea.vmem [#allocation10], 4
    %v393 = vld [vmem:[%s392] sm:$0xf]
    %v395 = vrot.slane %v391, 4
    %396 = vrot.lane.b32.xlu0 %v395, 64
    %v397 = vpop.permute.xlu0 %396
    %v399 = vmul.f32 %v393, %v397
    %v400 = vsub.f32 %v391, %v388
    %v402 = vrot.slane %v400, 4
    %403 = vrot.lane.b32.xlu0 %v402, 64
    %v404 = vpop.permute.xlu0 %403
    %v406 = vmul.f32 %v393, %v404
    %v407 = vadd.f32 %v313, %v406
    %s408 = scalar_lea.vmem [#allocation11], 4
    %409 = vst.msk [vmem:[%s408] sm:$0xf] %vm314, %v399
    %s410 = scalar_lea.vmem [#allocation11], 24
    %411 = vst.msk [vmem:[%s410] sm:$0xf] %vm317, %v399
    %v412 = vpack.c.bf16 %v407, %v407
    %v414 = vsel %vm242, %v412, 0
    %416 = vmatpush.bf16.msra.mxu0 0
    %417 = vmatpush.bf16.msra.mxu0 0
    %418 = vmatpush.bf16.msra.mxu0 0
    %419 = vmatpush.bf16.msra.mxu0 0
    %420 = vmatpush.bf16.msra.mxu0 %v232
    %421 = vmatpush.bf16.msra.mxu0 %v230
    %422 = vmatpush.bf16.msra.mxu0 %v228
    %423 = vmatpush.bf16.msra.mxu0 %v226
    %424 = vmatmul.bf16.gmra.mxu0 %v414
    %v425 = vpop.f32.mrf.mxu0
    %v426 = vadd.f32 0.0, %v425
    %v427 = vpop.f32.mrf.mxu0
    %428 = vdwg.mxu0
    %429 = vmatpush.bf16.msra.mxu0 0
    %430 = vmatpush.bf16.msra.mxu0 0
    %431 = vmatpush.bf16.msra.mxu0 0
    %432 = vmatpush.bf16.msra.mxu0 0
    %433 = vmatpush.bf16.msra.mxu0 %v233
    %434 = vmatpush.bf16.msra.mxu0 %v231
    %435 = vmatpush.bf16.msra.mxu0 %v229
    %436 = vmatpush.bf16.msra.mxu0 %v227
    %437 = vmatmul.bf16.gmra.mxu0 %v414
    %v438 = vpop.f32.mrf.mxu0
    %v439 = vadd.f32 0.0, %v438
    %v440 = vpop.f32.mrf.mxu0
    %441 = vdwg.mxu0
    %v442 = vadd.f32 %v156, %v426
    %v443 = vxor.u32 %v442, 2147483648
    %v444 = vmul.f32 %v443, 1.442695
    %v445 = vpow.pop %v444
    %v446 = vadd.f32 %v445, 1.0
    %v447 = vrcp.pop %v446
    %v448 = vmul.f32 %v446, %v447
    %v449 = vsub.f32 1.0, %v448
    %v450 = vmul.f32 %v447, %v449
    %v451 = vadd.f32 %v447, %v450
    %vm452 = vweird.f32 %v446
    %vm453 = vweird.f32 %v447
    %vm454 = vmor %vm452, %vm453
    %v455 = vsel %vm454, %v447, %v451
    %v456 = vand.u32 2147483647, %v446
    %vm457 = vcmp.eq.f32.partialorder %v456, 8.507059e+37
    %v458 = vand.u32 %v446, 2147483648
    %v459 = vor.u32 1.1754944e-38, %v458
    %v460 = vsel %vm457, %v459, %v455
    %v461 = vmul.f32 1.0, %v460
    %v462 = vadd.f32 %v439, %v293
    %v463 = vmul.f32 %v461, %v462
    %v464 = vadd.f32 %v185, %v463
    %v465 = vtanh.pop %v464
    %v466 = vsub.f32 1.0, %v461
    %468 = vrot.lane.b32.xlu0 %v465, 64
    %v469 = vpop.permute.xlu0 %468
    %v471 = vmul.f32 %v466, %v469
    %473 = vrot.lane.b32.xlu0 %v407, 64
    %v474 = vpop.permute.xlu0 %473
    %v476 = vmul.f32 %v461, %v474
    %v477 = vadd.f32 %v471, %v476
    %s478 = scalar_lea.vmem [#allocation10], 8
    %v479 = vld [vmem:[%s478] sm:$0xf]
    %481 = vrot.lane.b32.xlu0 %v477, 64
    %v482 = vpop.permute.xlu0 %481
    %v484 = vmul.f32 %v479, %v482
    %v485 = vsub.f32 %v477, %v474
    %487 = vrot.lane.b32.xlu0 %v485, 64
    %v488 = vpop.permute.xlu0 %487
    %v490 = vmul.f32 %v479, %v488
    %v491 = vadd.f32 %v407, %v490
    %s492 = scalar_lea.vmem [#allocation11], 8
    %493 = vst.msk [vmem:[%s492] sm:$0xf] %vm314, %v484
    %s494 = scalar_lea.vmem [#allocation11], 20
    %495 = vst.msk [vmem:[%s494] sm:$0xf] %vm317, %v484
    %v496 = vpack.c.bf16 %v491, %v491
    %v498 = vsel %vm242, %v496, 0
    %500 = vmatpush.bf16.msra.mxu0 0
    %501 = vmatpush.bf16.msra.mxu0 0
    %502 = vmatpush.bf16.msra.mxu0 0
    %503 = vmatpush.bf16.msra.mxu0 0
    %504 = vmatpush.bf16.msra.mxu0 %v232
    %505 = vmatpush.bf16.msra.mxu0 %v230
    %506 = vmatpush.bf16.msra.mxu0 %v228
    %507 = vmatpush.bf16.msra.mxu0 %v226
    %508 = vmatmul.bf16.gmra.mxu0 %v498
    %v509 = vpop.f32.mrf.mxu0
    %v510 = vadd.f32 0.0, %v509
    %v511 = vpop.f32.mrf.mxu0
    %512 = vdwg.mxu0
    %513 = vmatpush.bf16.msra.mxu0 0
    %514 = vmatpush.bf16.msra.mxu0 0
    %515 = vmatpush.bf16.msra.mxu0 0
    %516 = vmatpush.bf16.msra.mxu0 0
    %517 = vmatpush.bf16.msra.mxu0 %v233
    %518 = vmatpush.bf16.msra.mxu0 %v231
    %519 = vmatpush.bf16.msra.mxu0 %v229
    %520 = vmatpush.bf16.msra.mxu0 %v227
    %521 = vmatmul.bf16.gmra.mxu0 %v498
    %v522 = vpop.f32.mrf.mxu0
    %v523 = vadd.f32 0.0, %v522
    %v524 = vpop.f32.mrf.mxu0
    %525 = vdwg.mxu0
    %v527 = vrot.slane %v510, 4
    %v529 = vadd.f32 %v156, %v527
    %v530 = vxor.u32 %v529, 2147483648
    %v531 = vmul.f32 %v530, 1.442695
    %v532 = vpow.pop %v531
    %v533 = vadd.f32 %v532, 1.0
    %v534 = vrcp.pop %v533
    %v535 = vmul.f32 %v533, %v534
    %v536 = vsub.f32 1.0, %v535
    %v537 = vmul.f32 %v534, %v536
    %v538 = vadd.f32 %v534, %v537
    %vm539 = vweird.f32 %v533
    %vm540 = vweird.f32 %v534
    %vm541 = vmor %vm539, %vm540
    %v542 = vsel %vm541, %v534, %v538
    %v543 = vand.u32 2147483647, %v533
    %vm544 = vcmp.eq.f32.partialorder %v543, 8.507059e+37
    %v545 = vand.u32 %v533, 2147483648
    %v546 = vor.u32 1.1754944e-38, %v545
    %v547 = vsel %vm544, %v546, %v542
    %v548 = vmul.f32 1.0, %v547
    %v549 = vadd.f32 %v523, %v293
    %v551 = vrot.slane %v549, 4
    %v553 = vmul.f32 %v548, %v551
    %v554 = vadd.f32 %v185, %v553
    %v555 = vtanh.pop %v554
    %v556 = vsub.f32 1.0, %v548
    %558 = vrot.lane.b32.xlu0 %v555, 64
    %v559 = vpop.permute.xlu0 %558
    %v561 = vmul.f32 %v556, %v559
    %v563 = vrot.slane %v491, 4
    %564 = vrot.lane.b32.xlu0 %v563, 64
    %v565 = vpop.permute.xlu0 %564
    %v567 = vmul.f32 %v548, %v565
    %v568 = vadd.f32 %v561, %v567
    %s569 = scalar_lea.vmem [#allocation10], 12
    %v570 = vld [vmem:[%s569] sm:$0xf]
    %v572 = vrot.slane %v568, 4
    %573 = vrot.lane.b32.xlu0 %v572, 64
    %v574 = vpop.permute.xlu0 %573
    %v576 = vmul.f32 %v570, %v574
    %v577 = vsub.f32 %v568, %v565
    %v579 = vrot.slane %v577, 4
    %580 = vrot.lane.b32.xlu0 %v579, 64
    %v581 = vpop.permute.xlu0 %580
    %v583 = vmul.f32 %v570, %v581
    %v584 = vadd.f32 %v491, %v583
    %s585 = scalar_lea.vmem [#allocation11], 12
    %586 = vst.msk [vmem:[%s585] sm:$0xf] %vm314, %v576
    %s587 = scalar_lea.vmem [#allocation11], 16
    %588 = vst.msk [vmem:[%s587] sm:$0xf] %vm317, %v576
    %v589 = vpack.c.bf16 %v584, %v584
    %v591 = vsel %vm242, %v589, 0
    %593 = vmatpush.bf16.msra.mxu0 0
    %594 = vmatpush.bf16.msra.mxu0 0
    %595 = vmatpush.bf16.msra.mxu0 0
    %596 = vmatpush.bf16.msra.mxu0 0
    %597 = vmatpush.bf16.msra.mxu0 %v232
    %598 = vmatpush.bf16.msra.mxu0 %v230
    %599 = vmatpush.bf16.msra.mxu0 %v228
    %600 = vmatpush.bf16.msra.mxu0 %v226
    %601 = vmatmul.bf16.gmra.mxu0 %v591
    %v602 = vpop.f32.mrf.mxu0
    %v603 = vadd.f32 0.0, %v602
    %v604 = vpop.f32.mrf.mxu0
    %605 = vdwg.mxu0
    %606 = vmatpush.bf16.msra.mxu0 0
    %607 = vmatpush.bf16.msra.mxu0 0
    %608 = vmatpush.bf16.msra.mxu0 0
    %609 = vmatpush.bf16.msra.mxu0 0
    %610 = vmatpush.bf16.msra.mxu0 %v233
    %611 = vmatpush.bf16.msra.mxu0 %v231
    %612 = vmatpush.bf16.msra.mxu0 %v229
    %613 = vmatpush.bf16.msra.mxu0 %v227
    %614 = vmatmul.bf16.gmra.mxu0 %v591
    %v615 = vpop.f32.mrf.mxu0
    %v616 = vadd.f32 0.0, %v615
    %v617 = vpop.f32.mrf.mxu0
    %618 = vdwg.mxu0
    %v619 = vadd.f32 %v159, %v603
    %v620 = vxor.u32 %v619, 2147483648
    %v621 = vmul.f32 %v620, 1.442695
    %v622 = vpow.pop %v621
    %v623 = vadd.f32 %v622, 1.0
    %v624 = vrcp.pop %v623
    %v625 = vmul.f32 %v623, %v624
    %v626 = vsub.f32 1.0, %v625
    %v627 = vmul.f32 %v624, %v626
    %v628 = vadd.f32 %v624, %v627
    %vm629 = vweird.f32 %v623
    %vm630 = vweird.f32 %v624
    %vm631 = vmor %vm629, %vm630
    %v632 = vsel %vm631, %v624, %v628
    %v633 = vand.u32 2147483647, %v623
    %vm634 = vcmp.eq.f32.partialorder %v633, 8.507059e+37
    %v635 = vand.u32 %v623, 2147483648
    %v636 = vor.u32 1.1754944e-38, %v635
    %v637 = vsel %vm634, %v636, %v632
    %v638 = vmul.f32 1.0, %v637
    %v639 = vadd.f32 %v616, %v293
    %v640 = vmul.f32 %v638, %v639
    %v641 = vadd.f32 %v188, %v640
    %v642 = vtanh.pop %v641
    %v643 = vsub.f32 1.0, %v638
    %645 = vrot.lane.b32.xlu0 %v642, 64
    %v646 = vpop.permute.xlu0 %645
    %v648 = vmul.f32 %v643, %v646
    %650 = vrot.lane.b32.xlu0 %v584, 64
    %v651 = vpop.permute.xlu0 %650
    %v653 = vmul.f32 %v638, %v651
    %v654 = vadd.f32 %v648, %v653
    %s655 = scalar_lea.vmem [#allocation10], 16
    %v656 = vld [vmem:[%s655] sm:$0xf]
    %658 = vrot.lane.b32.xlu0 %v654, 64
    %v659 = vpop.permute.xlu0 %658
    %v661 = vmul.f32 %v656, %v659
    %v662 = vsub.f32 %v654, %v651
    %664 = vrot.lane.b32.xlu0 %v662, 64
    %v665 = vpop.permute.xlu0 %664
    %v667 = vmul.f32 %v656, %v665
    %v668 = vadd.f32 %v584, %v667
    %669 = vst.msk [vmem:[%s587] sm:$0xf] %vm314, %v661
    %670 = vst.msk [vmem:[%s585] sm:$0xf] %vm317, %v661
    %v671 = vpack.c.bf16 %v668, %v668
    %v673 = vsel %vm242, %v671, 0
    %675 = vmatpush.bf16.msra.mxu0 0
    %676 = vmatpush.bf16.msra.mxu0 0
    %677 = vmatpush.bf16.msra.mxu0 0
    %678 = vmatpush.bf16.msra.mxu0 0
    %679 = vmatpush.bf16.msra.mxu0 %v232
    %680 = vmatpush.bf16.msra.mxu0 %v230
    %681 = vmatpush.bf16.msra.mxu0 %v228
    %682 = vmatpush.bf16.msra.mxu0 %v226
    %683 = vmatmul.bf16.gmra.mxu0 %v673
    %v684 = vpop.f32.mrf.mxu0
    %v685 = vadd.f32 0.0, %v684
    %v686 = vpop.f32.mrf.mxu0
    %687 = vdwg.mxu0
    %688 = vmatpush.bf16.msra.mxu0 0
    %689 = vmatpush.bf16.msra.mxu0 0
    %690 = vmatpush.bf16.msra.mxu0 0
    %691 = vmatpush.bf16.msra.mxu0 0
    %692 = vmatpush.bf16.msra.mxu0 %v233
    %693 = vmatpush.bf16.msra.mxu0 %v231
    %694 = vmatpush.bf16.msra.mxu0 %v229
    %695 = vmatpush.bf16.msra.mxu0 %v227
    %696 = vmatmul.bf16.gmra.mxu0 %v673
    %v697 = vpop.f32.mrf.mxu0
    %v698 = vadd.f32 0.0, %v697
    %v699 = vpop.f32.mrf.mxu0
    %700 = vdwg.mxu0
    %v702 = vrot.slane %v685, 4
    %v704 = vadd.f32 %v159, %v702
    %v705 = vxor.u32 %v704, 2147483648
    %v706 = vmul.f32 %v705, 1.442695
    %v707 = vpow.pop %v706
    %v708 = vadd.f32 %v707, 1.0
    %v709 = vrcp.pop %v708
    %v710 = vmul.f32 %v708, %v709
    %v711 = vsub.f32 1.0, %v710
    %v712 = vmul.f32 %v709, %v711
    %v713 = vadd.f32 %v709, %v712
    %vm714 = vweird.f32 %v708
    %vm715 = vweird.f32 %v709
    %vm716 = vmor %vm714, %vm715
    %v717 = vsel %vm716, %v709, %v713
    %v718 = vand.u32 2147483647, %v708
    %vm719 = vcmp.eq.f32.partialorder %v718, 8.507059e+37
    %v720 = vand.u32 %v708, 2147483648
    %v721 = vor.u32 1.1754944e-38, %v720
    %v722 = vsel %vm719, %v721, %v717
    %v723 = vmul.f32 1.0, %v722
    %v724 = vadd.f32 %v698, %v293
    %v726 = vrot.slane %v724, 4
    %v728 = vmul.f32 %v723, %v726
    %v729 = vadd.f32 %v188, %v728
    %v730 = vtanh.pop %v729
    %v731 = vsub.f32 1.0, %v723
    %733 = vrot.lane.b32.xlu0 %v730, 64
    %v734 = vpop.permute.xlu0 %733
    %v736 = vmul.f32 %v731, %v734
    %v738 = vrot.slane %v668, 4
    %739 = vrot.lane.b32.xlu0 %v738, 64
    %v740 = vpop.permute.xlu0 %739
    %v742 = vmul.f32 %v723, %v740
    %v743 = vadd.f32 %v736, %v742
    %s744 = scalar_lea.vmem [#allocation10], 20
    %v745 = vld [vmem:[%s744] sm:$0xf]
    %v747 = vrot.slane %v743, 4
    %748 = vrot.lane.b32.xlu0 %v747, 64
    %v749 = vpop.permute.xlu0 %748
    %v751 = vmul.f32 %v745, %v749
    %v752 = vsub.f32 %v743, %v740
    %v754 = vrot.slane %v752, 4
    %755 = vrot.lane.b32.xlu0 %v754, 64
    %v756 = vpop.permute.xlu0 %755
    %v758 = vmul.f32 %v745, %v756
    %v759 = vadd.f32 %v668, %v758
    %760 = vst.msk [vmem:[%s494] sm:$0xf] %vm314, %v751
    %761 = vst.msk [vmem:[%s492] sm:$0xf] %vm317, %v751
    %v762 = vpack.c.bf16 %v759, %v759
    %v764 = vsel %vm242, %v762, 0
    %766 = vmatpush.bf16.msra.mxu0 0
    %767 = vmatpush.bf16.msra.mxu0 0
    %768 = vmatpush.bf16.msra.mxu0 0
    %769 = vmatpush.bf16.msra.mxu0 0
    %770 = vmatpush.bf16.msra.mxu0 %v232
    %771 = vmatpush.bf16.msra.mxu0 %v230
    %772 = vmatpush.bf16.msra.mxu0 %v228
    %773 = vmatpush.bf16.msra.mxu0 %v226
    %774 = vmatmul.bf16.gmra.mxu0 %v764
    %v775 = vpop.f32.mrf.mxu0
    %v776 = vadd.f32 0.0, %v775
    %v777 = vpop.f32.mrf.mxu0
    %778 = vdwg.mxu0
    %779 = vmatpush.bf16.msra.mxu0 0
    %780 = vmatpush.bf16.msra.mxu0 0
    %781 = vmatpush.bf16.msra.mxu0 0
    %782 = vmatpush.bf16.msra.mxu0 0
    %783 = vmatpush.bf16.msra.mxu0 %v233
    %784 = vmatpush.bf16.msra.mxu0 %v231
    %785 = vmatpush.bf16.msra.mxu0 %v229
    %786 = vmatpush.bf16.msra.mxu0 %v227
    %787 = vmatmul.bf16.gmra.mxu0 %v764
    %v788 = vpop.f32.mrf.mxu0
    %v789 = vadd.f32 0.0, %v788
    %v790 = vpop.f32.mrf.mxu0
    %791 = vdwg.mxu0
    %v792 = vadd.f32 %v162, %v776
    %v793 = vxor.u32 %v792, 2147483648
    %v794 = vmul.f32 %v793, 1.442695
    %v795 = vpow.pop %v794
    %v796 = vadd.f32 %v795, 1.0
    %v797 = vrcp.pop %v796
    %v798 = vmul.f32 %v796, %v797
    %v799 = vsub.f32 1.0, %v798
    %v800 = vmul.f32 %v797, %v799
    %v801 = vadd.f32 %v797, %v800
    %vm802 = vweird.f32 %v796
    %vm803 = vweird.f32 %v797
    %vm804 = vmor %vm802, %vm803
    %v805 = vsel %vm804, %v797, %v801
    %v806 = vand.u32 2147483647, %v796
    %vm807 = vcmp.eq.f32.partialorder %v806, 8.507059e+37
    %v808 = vand.u32 %v796, 2147483648
    %v809 = vor.u32 1.1754944e-38, %v808
    %v810 = vsel %vm807, %v809, %v805
    %v811 = vmul.f32 1.0, %v810
    %v812 = vadd.f32 %v789, %v293
    %v813 = vmul.f32 %v811, %v812
    %v814 = vadd.f32 %v191, %v813
    %v815 = vtanh.pop %v814
    %v816 = vsub.f32 1.0, %v811
    %818 = vrot.lane.b32.xlu0 %v815, 64
    %v819 = vpop.permute.xlu0 %818
    %v821 = vmul.f32 %v816, %v819
    %823 = vrot.lane.b32.xlu0 %v759, 64
    %v824 = vpop.permute.xlu0 %823
    %v826 = vmul.f32 %v811, %v824
    %v827 = vadd.f32 %v821, %v826
    %s828 = scalar_lea.vmem [#allocation10], 24
    %v829 = vld [vmem:[%s828] sm:$0xf]
    %831 = vrot.lane.b32.xlu0 %v827, 64
    %v832 = vpop.permute.xlu0 %831
    %v834 = vmul.f32 %v829, %v832
    %v835 = vsub.f32 %v827, %v824
    %837 = vrot.lane.b32.xlu0 %v835, 64
    %v838 = vpop.permute.xlu0 %837
    %v840 = vmul.f32 %v829, %v838
    %v841 = vadd.f32 %v759, %v840
    %842 = vst.msk [vmem:[%s410] sm:$0xf] %vm314, %v834
    %843 = vst.msk [vmem:[%s408] sm:$0xf] %vm317, %v834
    %v844 = vpack.c.bf16 %v841, %v841
    %v846 = vsel %vm242, %v844, 0
    %848 = vmatpush.bf16.msra.mxu0 0
    %849 = vmatpush.bf16.msra.mxu0 0
    %850 = vmatpush.bf16.msra.mxu0 0
    %851 = vmatpush.bf16.msra.mxu0 0
    %852 = vmatpush.bf16.msra.mxu0 %v232
    %853 = vmatpush.bf16.msra.mxu0 %v230
    %854 = vmatpush.bf16.msra.mxu0 %v228
    %855 = vmatpush.bf16.msra.mxu0 %v226
    %856 = vmatmul.bf16.gmra.mxu0 %v846
    %v857 = vpop.f32.mrf.mxu0
    %v858 = vadd.f32 0.0, %v857
    %v859 = vpop.f32.mrf.mxu0
    %860 = vdwg.mxu0
    %861 = vmatpush.bf16.msra.mxu0 0
    %862 = vmatpush.bf16.msra.mxu0 0
    %863 = vmatpush.bf16.msra.mxu0 0
    %864 = vmatpush.bf16.msra.mxu0 0
    %865 = vmatpush.bf16.msra.mxu0 %v233
    %866 = vmatpush.bf16.msra.mxu0 %v231
    %867 = vmatpush.bf16.msra.mxu0 %v229
    %868 = vmatpush.bf16.msra.mxu0 %v227
    %869 = vmatmul.bf16.gmra.mxu0 %v846
    %v870 = vpop.f32.mrf.mxu0
    %v871 = vadd.f32 0.0, %v870
    %v872 = vpop.f32.mrf.mxu0
    %873 = vdwg.mxu0
    %v875 = vrot.slane %v858, 4
    %v877 = vadd.f32 %v162, %v875
    %v878 = vxor.u32 %v877, 2147483648
    %v879 = vmul.f32 %v878, 1.442695
    %v880 = vpow.pop %v879
    %v881 = vadd.f32 %v880, 1.0
    %v882 = vrcp.pop %v881
    %v883 = vmul.f32 %v881, %v882
    %v884 = vsub.f32 1.0, %v883
    %v885 = vmul.f32 %v882, %v884
    %v886 = vadd.f32 %v882, %v885
    %vm887 = vweird.f32 %v881
    %vm888 = vweird.f32 %v882
    %vm889 = vmor %vm887, %vm888
    %v890 = vsel %vm889, %v882, %v886
    %v891 = vand.u32 2147483647, %v881
    %vm892 = vcmp.eq.f32.partialorder %v891, 8.507059e+37
    %v893 = vand.u32 %v881, 2147483648
    %v894 = vor.u32 1.1754944e-38, %v893
    %v895 = vsel %vm892, %v894, %v890
    %v896 = vmul.f32 1.0, %v895
    %v897 = vadd.f32 %v871, %v293
    %v899 = vrot.slane %v897, 4
    %v901 = vmul.f32 %v896, %v899
    %v902 = vadd.f32 %v191, %v901
    %v903 = vtanh.pop %v902
    %v904 = vsub.f32 1.0, %v896
    %906 = vrot.lane.b32.xlu0 %v903, 64
    %v907 = vpop.permute.xlu0 %906
    %v909 = vmul.f32 %v904, %v907
    %v911 = vrot.slane %v841, 4
    %912 = vrot.lane.b32.xlu0 %v911, 64
    %v913 = vpop.permute.xlu0 %912
    %v915 = vmul.f32 %v896, %v913
    %v916 = vadd.f32 %v909, %v915
    %s917 = scalar_lea.vmem [#allocation10], 28
    %v918 = vld [vmem:[%s917] sm:$0xf]
    %v920 = vrot.slane %v916, 4
    %921 = vrot.lane.b32.xlu0 %v920, 64
    %v922 = vpop.permute.xlu0 %921
    %v924 = vmul.f32 %v918, %v922
    %v925 = vsub.f32 %v916, %v913
    %v927 = vrot.slane %v925, 4
    %928 = vrot.lane.b32.xlu0 %v927, 64
    %v929 = vpop.permute.xlu0 %928
    %v931 = vmul.f32 %v918, %v929
    %v932 = vadd.f32 %v841, %v931
    %933 = vst.msk [vmem:[%s316] sm:$0xf] %vm314, %v924
    %934 = vst.msk [vmem:[#allocation11] sm:$0xf] %vm317, %v924
    %vm935 = vcmask 519168
    %936 = vst.msk [vmem:[#allocation12] sm:$0xf] %vm935, %v932
    // Predicated region
    $region46: #{tpu_custom_call.1} parent=1 // pred_check
      _
    $region47: #{tpu_custom_call.1} parent=1 // pred_check_branch
      %938 = sbr.rel (0) target = $region49
    $region48: #{tpu_custom_call.1} parent=1 // pred_region
      %940 = vsyncadd [#allocation4], 0
      %s941 = sshll.u32 [#allocation11], 4
      %s942 = int_to_ptr.vmem [resolvable:$true] %s941
      %s943 = sshll.u32 %s6, 4
      %s944 = int_to_ptr.hbm [resolvable:$true] %s943
      %949 = dma.vmem_to_hbm [thread:$0]  %s942, 512, %s944, [#allocation4], 64, 64, 4
    $region49: #{tpu_custom_call.1} parent=1 // pred_fallthru
      _
    // Predicated region
    $region50: #{tpu_custom_call.1} parent=1 // pred_check
      _
    $region51: #{tpu_custom_call.1} parent=1 // pred_check_branch
      %951 = sbr.rel (0) target = $region53
    $region52: #{tpu_custom_call.1} parent=1 // pred_region
      %953 = vsyncadd [#allocation13], 0
      %s955 = sshll.u32 [#allocation12], 4
      %s956 = int_to_ptr.vmem [resolvable:$true] %s955
      %s957 = sshll.u32 %s7, 4
      %s958 = int_to_ptr.hbm [resolvable:$true] %s957
      %960 = dma.vmem_to_hbm [thread:$0]  %s956, 64, %s958, [#allocation13]
    $region53: #{tpu_custom_call.1} parent=1 // pred_fallthru
      _
    // Predicated region
    $region54: #{tpu_custom_call.1} parent=1 // pred_check
      _
    $region55: #{tpu_custom_call.1} parent=1 // pred_check_branch
      %962 = sbr.rel (0) target = $region57
    $region56: #{tpu_custom_call.1} parent=1 // pred_region
      %964 = dma.done [#allocation4], 512
    $region57: #{tpu_custom_call.1} parent=1 // pred_fallthru
      _
    // Predicated region
    $region58: #{tpu_custom_call.1} parent=1 // pred_check
      _
    $region59: #{tpu_custom_call.1} parent=1 // pred_check_branch
      %966 = sbr.rel (0) target = $region61
    $region60: #{tpu_custom_call.1} parent=1 // pred_region
      %968 = dma.done [#allocation13], 64
    $region61: #{tpu_custom_call.1} parent=1 // pred_fallthru
      _
    %969 = vsyncpa [#allocation3], 1
    %970 = vsyncpa [#allocation6], 1
    %971 = vsyncpa [#allocation9], 1
    %972 = vsyncpa [#allocation4], 1
    %973 = vsyncpa [#allocation13], 1

</llo_original>
